<compile_context>
chip_gen: v7x
topology: tpu7x:2x2x1
jax: 0.10.0
libtpu: 0.0.40
codegen_flags: <defaults>
</compile_context>

<pallas_src>
import functools

import jax
import jax.numpy as jnp
from jax.experimental import pallas as pl
from jax.experimental.pallas import tpu as pltpu


def _softplus(x):
    # Numerically stable softplus: log(1 + exp(x))  (matches nn.Softplus default
    # beta=1; PyTorch's threshold=20 linearization is numerically equivalent).
    return jnp.maximum(x, 0.0) + jnp.log1p(jnp.exp(-jnp.abs(x)))


def _beta_nn_kernel(n_hidden_layers, x_ref, w1_ref, b1_ref, *rest):
    """Fused MLP forward for one batch tile (batch on lanes).

    x_ref:  (1, TB)            input tile (batch on lanes)
    w1_ref: (H, 1), b1_ref: (H, 1)
    rest = [wh_0 (H,H), bh_0 (H,1), ..., w_out (o2_pad,H), b_out (o2_pad,1),
            out_ref (o2_pad, TB)]
    """
    n_extra = n_hidden_layers - 1
    hidden_refs = rest[: 2 * n_extra]
    w_out_ref, b_out_ref, out_ref = rest[2 * n_extra:]

    x = x_ref[...]                                      # (1, TB) f32
    # First Linear(1, H): K=1, so a broadcast multiply beats an MXU matmul.
    h = _softplus(w1_ref[...] * x + b1_ref[...])        # (H, TB)

    # Remaining hidden Linear(H, H) + softplus layers (unrolled at trace time).
    for i in range(n_extra):
        w = hidden_refs[2 * i][...]                     # (H, H), stored (out, in)
        b = hidden_refs[2 * i + 1][...]                 # (H, 1)
        h = _softplus(jnp.dot(w, h, preferred_element_type=jnp.float32) + b)

    # Fused heads [fc_alpha | fc_beta | zero-pad] as one (o2_pad, H) @ (H, TB);
    # both heads take exp in BetaNN, so exp the whole slab (pad rows -> exp(0)=1,
    # sliced off in the wrapper) and do ONE lane-dense, full-sublane store.
    out = jnp.dot(w_out_ref[...], h, preferred_element_type=jnp.float32) + b_out_ref[...]
    out_ref[...] = jnp.exp(out)                         # (o2_pad, TB)


def _num_tensorcores():
    """Best-effort TensorCores-per-chip (v7x = 2, v5e/v6e = 1). Falls back to 1."""
    try:
        info = pltpu.get_tpu_info()
        for name in ("num_cores", "core_count", "num_tensorcores",
                     "tensor_cores_per_chip", "num_cores_per_chip"):
            n = getattr(info, name, None)
            if isinstance(n, int) and n > 0:
                return n
    except Exception:
        pass
    try:
        kind = jax.devices()[0].device_kind.lower()
        if "7" in kind:          # v7x family: 2 TensorCores per chip
            return 2
    except Exception:
        pass
    return 1


def _pick_batch_tile(b_padded, h, o2_pad, n_params, n_cores):
    """Pick the largest lane-aligned batch tile with grid_steps ~= n_cores.

    Per-step overhead (~0.35 us) dwarfs per-tile compute here, so fewer/bigger
    steps win; the only caps are lane alignment and a conservative VMEM budget
    (v5e default scoped VMEM is 16 MiB; v7x physical is 64 MiB).
    """
    weight_bytes = 4 * n_params * 2                     # pipeliner double-buffers
    per_lane_bytes = 4 * (2 * 1 + 2 * o2_pad + 3 * h)   # x/out tiles (x2) + temps
    budget = (12 << 20) - weight_bytes
    max_tb = max(128, (budget // per_lane_bytes) // 128 * 128)

    if n_cores >= 2:
        tb = b_padded // n_cores
        if b_padded % (n_cores * 128) == 0 and tb <= max_tb:
            return tb                                   # one tile per TensorCore
    if b_padded <= max_tb:
        return b_padded                                 # single step (1-TC parts)
    # Fall back to the largest lane-aligned divisor of b_padded under budget.
    tb = max_tb
    while tb > 128 and b_padded % tb:
        tb -= 128
    return tb


def beta_nn_forward(x, params, *, block_b=None):
    """Runs the fused BetaNN forward. x: (B, 1). Returns (alpha, beta), each (B, O)."""
    B = x.shape[0]
    w1, b1 = params["w1"], params["b1"]                  # (H, 1), (H, 1)
    hidden = params["hidden"]                            # list of (wh (H,H), bh (H,1))
    w_out, b_out = params["w_out"], params["b_out"]      # (2*O, H), (2*O, 1)
    H = w1.shape[0]
    o2 = w_out.shape[0]
    o_dim = o2 // 2
    n_hidden_layers = 1 + len(hidden)

    # Pad the fused head to a multiple of 8 rows -> full-sublane output store.
    o2_pad = max(8, -(-o2 // 8) * 8)
    if o2_pad != o2:
        w_out = jnp.pad(w_out, ((0, o2_pad - o2), (0, 0)))
        b_out = jnp.pad(b_out, ((0, o2_pad - o2), (0, 0)))

    # Batch onto lanes via a pure reshape (bitcast; no transpose HLO).  Pad the
    # batch to a multiple of 128 only when misaligned so tiles stay lane-aligned.
    x_t = jnp.reshape(x, (1, B))
    Bp = -(-B // 128) * 128
    if Bp != B:
        x_t = jnp.pad(x_t, ((0, 0), (0, Bp - B)))

    flat_hidden = [a for pair in hidden for a in pair]
    n_params = sum(int(a.size) for a in [w1, b1, w_out, b_out] + flat_hidden)

    if block_b is None:
        TB = _pick_batch_tile(Bp, H, o2_pad, n_params, _num_tensorcores())
    else:
        TB = block_b
    assert Bp % TB == 0, "padded batch must be divisible by the batch tile"
    assert TB == Bp or TB % 128 == 0, "batch tile must be lane-aligned"

    inputs = [x_t, w1, b1] + flat_hidden + [w_out, b_out]

    def bcast_spec(shape):
        # Weight/bias tiles: constant block index across the grid -> DMA'd once.
        return pl.BlockSpec(shape, lambda i: (0,) * len(shape))

    in_specs = [pl.BlockSpec((1, TB), lambda i: (0, i)),
                bcast_spec(w1.shape), bcast_spec(b1.shape)]
    in_specs += [bcast_spec(a.shape) for a in flat_hidden]
    in_specs += [bcast_spec(w_out.shape), bcast_spec(b_out.shape)]

    # ONE fused, lane-dense, full-sublane output block of shape (o2_pad, TB).
    out_specs = pl.BlockSpec((o2_pad, TB), lambda i: (0, i))
    out_shape = jax.ShapeDtypeStruct((o2_pad, Bp), jnp.float32)

    # Advisory cost estimate for XLA's scheduler.
    L = n_hidden_layers
    flops = 2 * Bp * H + 2 * Bp * H * H * (L - 1) + 2 * Bp * H * o2_pad
    transcendentals = 2 * Bp * H * L + Bp * o2_pad
    bytes_accessed = 4 * (Bp + Bp * o2_pad + n_params)
    cost = pl.CostEstimate(flops=int(flops), transcendentals=int(transcendentals),
                           bytes_accessed=int(bytes_accessed))

    # Only raise the scoped VMEM limit when the footprint could exceed the
    # default (relevant once H/L scale up; v7x has only 64 MiB physical VMEM).
    vmem_est = 4 * n_params * 2 + 4 * (2 * 1 + 2 * o2_pad + 3 * H) * TB
    cp_kwargs = dict(dimension_semantics=("parallel",))
    if vmem_est > (12 << 20):
        cp_kwargs["vmem_limit_bytes"] = int(min(max(2 * vmem_est, 16 << 20), 64 << 20))

    kernel = functools.partial(_beta_nn_kernel, n_hidden_layers)
    out = pl.pallas_call(
        kernel,
        grid=(Bp // TB,),
        in_specs=in_specs,
        out_specs=out_specs,
        out_shape=out_shape,
        cost_estimate=cost,
        compiler_params=pltpu.CompilerParams(**cp_kwargs),
    )(*inputs)

    if Bp != B:
        out = out[:, :B]
    if o_dim == 1:
        # One dim is size 1 -> reshape is a pure bitcast (no transpose HLO).
        alpha = jnp.reshape(out[0:1, :], (B, 1))
        beta = jnp.reshape(out[1:2, :], (B, 1))
    else:
        alpha = jnp.transpose(out[:o_dim, :])
        beta = jnp.transpose(out[o_dim:o2, :])
    return alpha, beta


def init_params(key, hidden_dim, n_hidden_layers, output_dim):
    """Deterministic synthetic init (uniform +-1/sqrt(fan_in), like nn.Linear).

    All weights are stored (out, in) and biases (out, 1) so the kernel computes
    W @ h with batch on lanes.
    """
    keys = jax.random.split(key, 2 * (n_hidden_layers + 2))
    kit = iter(keys)

    def linear(in_f, out_f):
        bound = 1.0 / jnp.sqrt(jnp.float32(in_f))
        w = jax.random.uniform(next(kit), (out_f, in_f), jnp.float32, -bound, bound)
        b = jax.random.uniform(next(kit), (out_f, 1), jnp.float32, -bound, bound)
        return w, b

    w1, b1 = linear(1, hidden_dim)
    hidden = [linear(hidden_dim, hidden_dim) for _ in range(n_hidden_layers - 1)]
    w_a, b_a = linear(hidden_dim, output_dim)
    w_b, b_b = linear(hidden_dim, output_dim)
    # Fuse fc_alpha and fc_beta into one output projection: rows [alpha | beta].
    w_out = jnp.concatenate([w_a, w_b], axis=0)          # (2*O, H)
    b_out = jnp.concatenate([b_a, b_b], axis=0)          # (2*O, 1)
    return {"w1": w1, "b1": b1, "hidden": hidden, "w_out": w_out, "b_out": b_out}


def reference_forward(x, params):
    """Pure-JAX reference of the PyTorch forward, for a correctness check."""
    h = jax.nn.softplus(x @ params["w1"].T + params["b1"].T)
    for w, b in params["hidden"]:
        h = jax.nn.softplus(h @ w.T + b.T)
    out = jnp.exp(h @ params["w_out"].T + params["b_out"].T)
    o = params["w_out"].shape[0] // 2
    return out[:, :o], out[:, o:]


if __name__ == "__main__":
    hidden_dim = 32
    n_hidden_layers = 2
    output_dim = 1

    key = jax.random.PRNGKey(0)
    k_param, k_x, k_x2 = jax.random.split(key, 3)
    params = init_params(k_param, hidden_dim, n_hidden_layers, output_dim)

    # Lane-aligned batch: 1 grid step on 1-TC chips, 2 parallel tiles on v7x.
    batch = 1024
    x = jax.random.normal(k_x, (batch, 1), jnp.float32)
    alpha, beta = beta_nn_forward(x, params)
    jax.block_until_ready((alpha, beta))

    alpha_ref, beta_ref = reference_forward(x, params)
    assert alpha.shape == (batch, output_dim) and beta.shape == (batch, output_dim)
    assert jnp.allclose(alpha, alpha_ref, atol=1e-5, rtol=1e-5)
    assert jnp.allclose(beta, beta_ref, atol=1e-5, rtol=1e-5)
    assert bool(jnp.all(alpha > 0.0)) and bool(jnp.all(beta > 0.0))

    # Misaligned batch exercises the wrapper-side pad-to-128 robustness path.
    batch2 = 37
    x2 = jax.random.normal(k_x2, (batch2, 1), jnp.float32)
    alpha2, beta2 = beta_nn_forward(x2, params)
    jax.block_until_ready((alpha2, beta2))
    alpha2_ref, beta2_ref = reference_forward(x2, params)
    assert alpha2.shape == (batch2, output_dim) and beta2.shape == (batch2, output_dim)
    assert jnp.allclose(alpha2, alpha2_ref, atol=1e-5, rtol=1e-5)
    assert jnp.allclose(beta2, beta2_ref, atol=1e-5, rtol=1e-5)

    print("KERNEL_OK")
</pallas_src>

<mosaic_0001>
module attributes {stable_mosaic.version = 11 : i64} {
  func.func @_beta_nn_kernel(%arg0: i32, %arg1: memref<1x1024xf32, #tpu.memory_space<vmem>>, %arg2: memref<32x1xf32, #tpu.memory_space<vmem>>, %arg3: memref<32x1xf32, #tpu.memory_space<vmem>>, %arg4: memref<32x32xf32, #tpu.memory_space<vmem>>, %arg5: memref<32x1xf32, #tpu.memory_space<vmem>>, %arg6: memref<8x32xf32, #tpu.memory_space<vmem>>, %arg7: memref<8x1xf32, #tpu.memory_space<vmem>>, %arg8: memref<8x1024xf32, #tpu.memory_space<vmem>>) attributes {dimension_semantics = [#tpu.dimension_semantics<parallel>], iteration_bounds = array<i64: 1>, scalar_prefetch = 0 : i64, scratch_operands = 0 : i64, tpu.core_type = #tpu.core_type<tc>, window_params = [{transform_indices = @transform_0, window_bounds = array<i64: 1, 1024>}, {pipeline_mode = #tpu.pipeline_mode<synchronous>, transform_indices = @transform_1, window_bounds = array<i64: 32, 1>}, {pipeline_mode = #tpu.pipeline_mode<synchronous>, transform_indices = @transform_2, window_bounds = array<i64: 32, 1>}, {pipeline_mode = #tpu.pipeline_mode<synchronous>, transform_indices = @transform_3, window_bounds = array<i64: 32, 32>}, {pipeline_mode = #tpu.pipeline_mode<synchronous>, transform_indices = @transform_4, window_bounds = array<i64: 32, 1>}, {pipeline_mode = #tpu.pipeline_mode<synchronous>, transform_indices = @transform_5, window_bounds = array<i64: 8, 32>}, {pipeline_mode = #tpu.pipeline_mode<synchronous>, transform_indices = @transform_6, window_bounds = array<i64: 8, 1>}, {transform_indices = @transform_7, window_bounds = array<i64: 8, 1024>}]} {
    %c0 = arith.constant 0 : index
    %c0_0 = arith.constant 0 : index
    %0 = vector.load %arg1[%c0, %c0_0] : memref<1x1024xf32, #tpu.memory_space<vmem>>, vector<1x1024xf32>
    %c0_1 = arith.constant 0 : index
    %c0_2 = arith.constant 0 : index
    %1 = vector.load %arg2[%c0_1, %c0_2] : memref<32x1xf32, #tpu.memory_space<vmem>>, vector<32x1xf32>
    %2 = vector.broadcast %1 : vector<32x1xf32> to vector<32x1024xf32>
    %3 = vector.broadcast %0 : vector<1x1024xf32> to vector<32x1024xf32>
    %4 = arith.mulf %2, %3 : vector<32x1024xf32>
    %c0_3 = arith.constant 0 : index
    %c0_4 = arith.constant 0 : index
    %5 = vector.load %arg3[%c0_3, %c0_4] : memref<32x1xf32, #tpu.memory_space<vmem>>, vector<32x1xf32>
    %6 = vector.broadcast %5 : vector<32x1xf32> to vector<32x1024xf32>
    %7 = arith.addf %4, %6 : vector<32x1024xf32>
    %cst = arith.constant 0.000000e+00 : f32
    %8 = vector.broadcast %cst : f32 to vector<32x1024xf32>
    %9 = arith.maximumf %7, %8 : vector<32x1024xf32>
    %10 = math.absf %7 : vector<32x1024xf32>
    %cst_5 = arith.constant 0.000000e+00 : f32
    %11 = vector.broadcast %cst_5 : f32 to vector<32x1024xf32>
    %12 = arith.subf %11, %10 : vector<32x1024xf32>
    %13 = math.exp %12 : vector<32x1024xf32>
    %14 = math.log1p %13 : vector<32x1024xf32>
    %15 = arith.addf %9, %14 : vector<32x1024xf32>
    %c0_6 = arith.constant 0 : index
    %c0_7 = arith.constant 0 : index
    %16 = vector.load %arg4[%c0_6, %c0_7] : memref<32x32xf32, #tpu.memory_space<vmem>>, vector<32x32xf32>
    %c0_8 = arith.constant 0 : index
    %c0_9 = arith.constant 0 : index
    %17 = vector.load %arg5[%c0_8, %c0_9] : memref<32x1xf32, #tpu.memory_space<vmem>>, vector<32x1xf32>
    %cst_10 = arith.constant dense<0.000000e+00> : vector<32x1024xf32>
    %18 = tpu.matmul %16, %15, %cst_10 {dimension_numbers = #tpu.dot_dimension_numbers<[1], [0], [0], [1], [0, 0, 1, 1], [], []>} : vector<32x32xf32>, vector<32x1024xf32>, vector<32x1024xf32> -> vector<32x1024xf32>
    %19 = vector.broadcast %17 : vector<32x1xf32> to vector<32x1024xf32>
    %20 = arith.addf %18, %19 : vector<32x1024xf32>
    %cst_11 = arith.constant 0.000000e+00 : f32
    %21 = vector.broadcast %cst_11 : f32 to vector<32x1024xf32>
    %22 = arith.maximumf %20, %21 : vector<32x1024xf32>
    %23 = math.absf %20 : vector<32x1024xf32>
    %cst_12 = arith.constant 0.000000e+00 : f32
    %24 = vector.broadcast %cst_12 : f32 to vector<32x1024xf32>
    %25 = arith.subf %24, %23 : vector<32x1024xf32>
    %26 = math.exp %25 : vector<32x1024xf32>
    %27 = math.log1p %26 : vector<32x1024xf32>
    %28 = arith.addf %22, %27 : vector<32x1024xf32>
    %c0_13 = arith.constant 0 : index
    %c0_14 = arith.constant 0 : index
    %29 = vector.load %arg6[%c0_13, %c0_14] : memref<8x32xf32, #tpu.memory_space<vmem>>, vector<8x32xf32>
    %cst_15 = arith.constant dense<0.000000e+00> : vector<8x1024xf32>
    %30 = tpu.matmul %29, %28, %cst_15 {dimension_numbers = #tpu.dot_dimension_numbers<[1], [0], [0], [1], [0, 0, 1, 1], [], []>} : vector<8x32xf32>, vector<32x1024xf32>, vector<8x1024xf32> -> vector<8x1024xf32>
    %c0_16 = arith.constant 0 : index
    %c0_17 = arith.constant 0 : index
    %31 = vector.load %arg7[%c0_16, %c0_17] : memref<8x1xf32, #tpu.memory_space<vmem>>, vector<8x1xf32>
    %32 = vector.broadcast %31 : vector<8x1xf32> to vector<8x1024xf32>
    %33 = arith.addf %30, %32 : vector<8x1024xf32>
    %34 = math.exp %33 : vector<8x1024xf32>
    %c0_18 = arith.constant 0 : index
    %c0_19 = arith.constant 0 : index
    %35 = vector.load %arg8[%c0_18, %c0_19] : memref<8x1024xf32, #tpu.memory_space<vmem>>, vector<8x1024xf32>
    tpu.vector_store %arg8[%c0_18, %c0_19], %34 {strides = array<i32>} : memref<8x1024xf32, #tpu.memory_space<vmem>>, vector<8x1024xf32>,
    return
  }
  func.func @transform_0(%arg0: i32) -> (i32, i32) {
    %c0_i32 = arith.constant 0 : i32
    %c0_i32_0 = arith.constant 0 : i32
    return %c0_i32, %arg0 : i32, i32
  }
  func.func @transform_1(%arg0: i32) -> (i32, i32) {
    %c0_i32 = arith.constant 0 : i32
    %c0_i32_0 = arith.constant 0 : i32
    %c0_i32_1 = arith.constant 0 : i32
    return %c0_i32, %c0_i32_0 : i32, i32
  }
  func.func @transform_2(%arg0: i32) -> (i32, i32) {
    %c0_i32 = arith.constant 0 : i32
    %c0_i32_0 = arith.constant 0 : i32
    %c0_i32_1 = arith.constant 0 : i32
    return %c0_i32, %c0_i32_0 : i32, i32
  }
  func.func @transform_3(%arg0: i32) -> (i32, i32) {
    %c0_i32 = arith.constant 0 : i32
    %c0_i32_0 = arith.constant 0 : i32
    %c0_i32_1 = arith.constant 0 : i32
    return %c0_i32, %c0_i32_0 : i32, i32
  }
  func.func @transform_4(%arg0: i32) -> (i32, i32) {
    %c0_i32 = arith.constant 0 : i32
    %c0_i32_0 = arith.constant 0 : i32
    %c0_i32_1 = arith.constant 0 : i32
    return %c0_i32, %c0_i32_0 : i32, i32
  }
  func.func @transform_5(%arg0: i32) -> (i32, i32) {
    %c0_i32 = arith.constant 0 : i32
    %c0_i32_0 = arith.constant 0 : i32
    %c0_i32_1 = arith.constant 0 : i32
    return %c0_i32, %c0_i32_0 : i32, i32
  }
  func.func @transform_6(%arg0: i32) -> (i32, i32) {
    %c0_i32 = arith.constant 0 : i32
    %c0_i32_0 = arith.constant 0 : i32
    %c0_i32_1 = arith.constant 0 : i32
    return %c0_i32, %c0_i32_0 : i32, i32
  }
  func.func @transform_7(%arg0: i32) -> (i32, i32) {
    %c0_i32 = arith.constant 0 : i32
    %c0_i32_0 = arith.constant 0 : i32
    return %c0_i32, %arg0 : i32, i32
  }
}

</mosaic_0001>

<llo_original>
// kernel: tpu_custom_call.1
$region0: #{tpu_custom_call.1}
  #allocation0 [shape = 'u32[]', space=smem, size = 0x4, offset = 0x4, fixed_abs, tag = 'smem constant byte address 0x4 - core index']
  #allocation1 [shape = 'u32[144,128]{1,0:T(1,128)}', space=vmem, size = 0x12000, scoped, tag = 'internal scratch']
  %s0 = inlined_call_operand.vmem [shape: f32[1,1024], index: 0, kind: input, shape index: {}]
  %s1 = inlined_call_operand.vmem [shape: f32[32,1], index: 1, kind: input, shape index: {}]
  %s2 = inlined_call_operand.vmem [shape: f32[32,1], index: 2, kind: input, shape index: {}]
  %s3 = inlined_call_operand.vmem [shape: f32[32,32], index: 3, kind: input, shape index: {}]
  %s4 = inlined_call_operand.vmem [shape: f32[32,1], index: 4, kind: input, shape index: {}]
  %s5 = inlined_call_operand.vmem [shape: f32[8,32], index: 5, kind: input, shape index: {}]
  %s6 = inlined_call_operand.vmem [shape: f32[8,1], index: 6, kind: input, shape index: {}]
  %s7 = inlined_call_operand.hbm [shape: f32[8,1024], index: 7, kind: output, shape index: {}]
  %s8 = sld [smem:[#allocation0]]
  $region38: #{tpu_custom_call.1} parent=0
    _
  %s10 = ssub.s32 1, %s8
  %s11 = scalar_select 0, %s10, %s8
  $region1: #{tpu_custom_call.1} parent=0
    #allocation2 [shape = 'u8[32768]{0}', space=vmem, size = 0x8000, scoped, tag = 'output window, operand 0, single buffered']
    #allocation3 [shape = 's32[1]{0}', space=sflag, size = 0x4, scoped, tag = 'scoped memory for tpu_custom_call.1']
    %12 = vsyncpa [#allocation3], 0
    // Predicated region
    $region2: #{tpu_custom_call.1} parent=1 // pred_check
      _
    $region3: #{tpu_custom_call.1} parent=1 // pred_check_branch
      %14 = sbr.rel (0) target = $region5
    $region4: #{tpu_custom_call.1} parent=1 // pred_region
      _
    $region5: #{tpu_custom_call.1} parent=1 // pred_fallthru
      _
    // Predicated region
    $region6: #{tpu_custom_call.1} parent=1 // pred_check
      _
    $region7: #{tpu_custom_call.1} parent=1 // pred_check_branch
      %16 = sbr.rel (0) target = $region9
    $region8: #{tpu_custom_call.1} parent=1 // pred_region
      _
    $region9: #{tpu_custom_call.1} parent=1 // pred_fallthru
      _
    // Predicated region
    $region10: #{tpu_custom_call.1} parent=1 // pred_check
      _
    $region11: #{tpu_custom_call.1} parent=1 // pred_check_branch
      %18 = sbr.rel (0) target = $region13
    $region12: #{tpu_custom_call.1} parent=1 // pred_region
      _
    $region13: #{tpu_custom_call.1} parent=1 // pred_fallthru
      _
    // Predicated region
    $region14: #{tpu_custom_call.1} parent=1 // pred_check
      _
    $region15: #{tpu_custom_call.1} parent=1 // pred_check_branch
      %20 = sbr.rel (0) target = $region17
    $region16: #{tpu_custom_call.1} parent=1 // pred_region
      _
    $region17: #{tpu_custom_call.1} parent=1 // pred_fallthru
      _
    // Predicated region
    $region18: #{tpu_custom_call.1} parent=1 // pred_check
      _
    $region19: #{tpu_custom_call.1} parent=1 // pred_check_branch
      %22 = sbr.rel (0) target = $region21
    $region20: #{tpu_custom_call.1} parent=1 // pred_region
      _
    $region21: #{tpu_custom_call.1} parent=1 // pred_fallthru
      _
    // Predicated region
    $region22: #{tpu_custom_call.1} parent=1 // pred_check
      _
    $region23: #{tpu_custom_call.1} parent=1 // pred_check_branch
      %24 = sbr.rel (0) target = $region25
    $region24: #{tpu_custom_call.1} parent=1 // pred_region
      _
    $region25: #{tpu_custom_call.1} parent=1 // pred_fallthru
      _
    // Predicated region
    $region26: #{tpu_custom_call.1} parent=1 // pred_check
      _
    $region27: #{tpu_custom_call.1} parent=1 // pred_check_branch
      %26 = sbr.rel (0) target = $region29
    $region28: #{tpu_custom_call.1} parent=1 // pred_region
      _
    $region29: #{tpu_custom_call.1} parent=1 // pred_fallthru
      _
    %v27 = vld [vmem:[%s0] sm:$0xff]
    %v28 = vld [vmem:[%s1] sm:$0xff]
    %v29 = vld [vmem:[%s1 + $0x8] sm:$0xff]
    %v30 = vld [vmem:[%s1 + $0x10] sm:$0xff]
    %v31 = vld [vmem:[%s1 + $0x18] sm:$0xff]
    %33 = vset.pattern.permute.xlu0 0
    %34 = vperm.xlu0 %33, %v28
    %v35 = vpop.permute.xlu0 %34
    %38 = vset.pattern.permute.xlu0 0
    %39 = vperm.xlu0 %38, %v29
    %v40 = vpop.permute.xlu0 %39
    %43 = vset.pattern.permute.xlu0 0
    %44 = vperm.xlu0 %43, %v30
    %v45 = vpop.permute.xlu0 %44
    %48 = vset.pattern.permute.xlu0 0
    %49 = vperm.xlu0 %48, %v31
    %v50 = vpop.permute.xlu0 %49
    %v53 = vlaneseq
    %v54 = vshrl.u32 %v53, 7
    %v55 = vsub.s32 0, %v54
    %v56 = vrot.slane %v27, %v55
    %v57 = vlaneseq
    %v58 = vshrl.u32 %v57, 7
    %v59 = vsub.s32 1, %v58
    %v60 = vrot.slane %v27, %v59
    %v61 = vlaneseq
    %v62 = vshrl.u32 %v61, 7
    %v63 = vsub.s32 2, %v62
    %v64 = vrot.slane %v27, %v63
    %v65 = vlaneseq
    %v66 = vshrl.u32 %v65, 7
    %v67 = vsub.s32 3, %v66
    %v68 = vrot.slane %v27, %v67
    %v69 = vlaneseq
    %v70 = vshrl.u32 %v69, 7
    %v71 = vsub.s32 4, %v70
    %v72 = vrot.slane %v27, %v71
    %v73 = vlaneseq
    %v74 = vshrl.u32 %v73, 7
    %v75 = vsub.s32 5, %v74
    %v76 = vrot.slane %v27, %v75
    %v77 = vlaneseq
    %v78 = vshrl.u32 %v77, 7
    %v79 = vsub.s32 6, %v78
    %v80 = vrot.slane %v27, %v79
    %v81 = vlaneseq
    %v82 = vshrl.u32 %v81, 7
    %v83 = vsub.s32 7, %v82
    %v84 = vrot.slane %v27, %v83
    %v93 = vmul.f32 %v35, %v56
    %v94 = vmul.f32 %v35, %v60
    %v95 = vmul.f32 %v35, %v64
    %v96 = vmul.f32 %v35, %v68
    %v97 = vmul.f32 %v35, %v72
    %v98 = vmul.f32 %v35, %v76
    %v99 = vmul.f32 %v35, %v80
    %v100 = vmul.f32 %v35, %v84
    %v101 = vmul.f32 %v40, %v56
    %v102 = vmul.f32 %v40, %v60
    %v103 = vmul.f32 %v40, %v64
    %v104 = vmul.f32 %v40, %v68
    %v105 = vmul.f32 %v40, %v72
    %v106 = vmul.f32 %v40, %v76
    %v107 = vmul.f32 %v40, %v80
    %v108 = vmul.f32 %v40, %v84
    %v109 = vmul.f32 %v45, %v56
    %v110 = vmul.f32 %v45, %v60
    %v111 = vmul.f32 %v45, %v64
    %v112 = vmul.f32 %v45, %v68
    %v113 = vmul.f32 %v45, %v72
    %v114 = vmul.f32 %v45, %v76
    %v115 = vmul.f32 %v45, %v80
    %v116 = vmul.f32 %v45, %v84
    %v117 = vmul.f32 %v50, %v56
    %v118 = vmul.f32 %v50, %v60
    %v119 = vmul.f32 %v50, %v64
    %v120 = vmul.f32 %v50, %v68
    %v121 = vmul.f32 %v50, %v72
    %v122 = vmul.f32 %v50, %v76
    %v123 = vmul.f32 %v50, %v80
    %v124 = vmul.f32 %v50, %v84
    %v125 = vld [vmem:[%s2] sm:$0xff]
    %v126 = vld [vmem:[%s2 + $0x8] sm:$0xff]
    %v127 = vld [vmem:[%s2 + $0x10] sm:$0xff]
    %v128 = vld [vmem:[%s2 + $0x18] sm:$0xff]
    %130 = vset.pattern.permute.xlu0 0
    %131 = vperm.xlu0 %130, %v125
    %v132 = vpop.permute.xlu0 %131
    %135 = vset.pattern.permute.xlu0 0
    %136 = vperm.xlu0 %135, %v126
    %v137 = vpop.permute.xlu0 %136
    %140 = vset.pattern.permute.xlu0 0
    %141 = vperm.xlu0 %140, %v127
    %v142 = vpop.permute.xlu0 %141
    %145 = vset.pattern.permute.xlu0 0
    %146 = vperm.xlu0 %145, %v128
    %v147 = vpop.permute.xlu0 %146
    %v149 = vadd.f32 %v93, %v132
    %v150 = vadd.f32 %v94, %v132
    %v151 = vadd.f32 %v95, %v132
    %v152 = vadd.f32 %v96, %v132
    %v153 = vadd.f32 %v97, %v132
    %v154 = vadd.f32 %v98, %v132
    %v155 = vadd.f32 %v99, %v132
    %v156 = vadd.f32 %v100, %v132
    %v157 = vadd.f32 %v101, %v137
    %v158 = vadd.f32 %v102, %v137
    %v159 = vadd.f32 %v103, %v137
    %v160 = vadd.f32 %v104, %v137
    %v161 = vadd.f32 %v105, %v137
    %v162 = vadd.f32 %v106, %v137
    %v163 = vadd.f32 %v107, %v137
    %v164 = vadd.f32 %v108, %v137
    %v165 = vadd.f32 %v109, %v142
    %v166 = vadd.f32 %v110, %v142
    %v167 = vadd.f32 %v111, %v142
    %v168 = vadd.f32 %v112, %v142
    %v169 = vadd.f32 %v113, %v142
    %v170 = vadd.f32 %v114, %v142
    %v171 = vadd.f32 %v115, %v142
    %v172 = vadd.f32 %v116, %v142
    %v173 = vadd.f32 %v117, %v147
    %v174 = vadd.f32 %v118, %v147
    %v175 = vadd.f32 %v119, %v147
    %v176 = vadd.f32 %v120, %v147
    %v177 = vadd.f32 %v121, %v147
    %v178 = vadd.f32 %v122, %v147
    %v179 = vadd.f32 %v123, %v147
    %v180 = vadd.f32 %v124, %v147
    %v181 = vmax.f32 %v149, 0.0
    %v182 = vmax.f32 %v150, 0.0
    %v183 = vmax.f32 %v151, 0.0
    %v184 = vmax.f32 %v152, 0.0
    %v185 = vmax.f32 %v153, 0.0
    %v186 = vmax.f32 %v154, 0.0
    %v187 = vmax.f32 %v155, 0.0
    %v188 = vmax.f32 %v156, 0.0
    %v189 = vmax.f32 %v157, 0.0
    %v190 = vmax.f32 %v158, 0.0
    %v191 = vmax.f32 %v159, 0.0
    %v192 = vmax.f32 %v160, 0.0
    %v193 = vmax.f32 %v161, 0.0
    %v194 = vmax.f32 %v162, 0.0
    %v195 = vmax.f32 %v163, 0.0
    %v196 = vmax.f32 %v164, 0.0
    %v197 = vmax.f32 %v165, 0.0
    %v198 = vmax.f32 %v166, 0.0
    %v199 = vmax.f32 %v167, 0.0
    %v200 = vmax.f32 %v168, 0.0
    %v201 = vmax.f32 %v169, 0.0
    %v202 = vmax.f32 %v170, 0.0
    %v203 = vmax.f32 %v171, 0.0
    %v204 = vmax.f32 %v172, 0.0
    %v205 = vmax.f32 %v173, 0.0
    %v206 = vmax.f32 %v174, 0.0
    %v207 = vmax.f32 %v175, 0.0
    %v208 = vmax.f32 %v176, 0.0
    %v209 = vmax.f32 %v177, 0.0
    %v210 = vmax.f32 %v178, 0.0
    %v211 = vmax.f32 %v179, 0.0
    %v212 = vmax.f32 %v180, 0.0
    %v213 = vand.u32 2147483647, %v149
    %v214 = vand.u32 2147483647, %v150
    %v215 = vand.u32 2147483647, %v151
    %v216 = vand.u32 2147483647, %v152
    %v217 = vand.u32 2147483647, %v153
    %v218 = vand.u32 2147483647, %v154
    %v219 = vand.u32 2147483647, %v155
    %v220 = vand.u32 2147483647, %v156
    %v221 = vand.u32 2147483647, %v157
    %v222 = vand.u32 2147483647, %v158
    %v223 = vand.u32 2147483647, %v159
    %v224 = vand.u32 2147483647, %v160
    %v225 = vand.u32 2147483647, %v161
    %v226 = vand.u32 2147483647, %v162
    %v227 = vand.u32 2147483647, %v163
    %v228 = vand.u32 2147483647, %v164
    %v229 = vand.u32 2147483647, %v165
    %v230 = vand.u32 2147483647, %v166
    %v231 = vand.u32 2147483647, %v167
    %v232 = vand.u32 2147483647, %v168
    %v233 = vand.u32 2147483647, %v169
    %v234 = vand.u32 2147483647, %v170
    %v235 = vand.u32 2147483647, %v171
    %v236 = vand.u32 2147483647, %v172
    %v237 = vand.u32 2147483647, %v173
    %v238 = vand.u32 2147483647, %v174
    %v239 = vand.u32 2147483647, %v175
    %v240 = vand.u32 2147483647, %v176
    %v241 = vand.u32 2147483647, %v177
    %v242 = vand.u32 2147483647, %v178
    %v243 = vand.u32 2147483647, %v179
    %v244 = vand.u32 2147483647, %v180
    %v245 = vsub.f32 0.0, %v213
    %v246 = vsub.f32 0.0, %v214
    %v247 = vsub.f32 0.0, %v215
    %v248 = vsub.f32 0.0, %v216
    %v249 = vsub.f32 0.0, %v217
    %v250 = vsub.f32 0.0, %v218
    %v251 = vsub.f32 0.0, %v219
    %v252 = vsub.f32 0.0, %v220
    %v253 = vsub.f32 0.0, %v221
    %v254 = vsub.f32 0.0, %v222
    %v255 = vsub.f32 0.0, %v223
    %v256 = vsub.f32 0.0, %v224
    %v257 = vsub.f32 0.0, %v225
    %v258 = vsub.f32 0.0, %v226
    %v259 = vsub.f32 0.0, %v227
    %v260 = vsub.f32 0.0, %v228
    %v261 = vsub.f32 0.0, %v229
    %v262 = vsub.f32 0.0, %v230
    %v263 = vsub.f32 0.0, %v231
    %v264 = vsub.f32 0.0, %v232
    %v265 = vsub.f32 0.0, %v233
    %v266 = vsub.f32 0.0, %v234
    %v267 = vsub.f32 0.0, %v235
    %v268 = vsub.f32 0.0, %v236
    %v269 = vsub.f32 0.0, %v237
    %v270 = vsub.f32 0.0, %v238
    %v271 = vsub.f32 0.0, %v239
    %v272 = vsub.f32 0.0, %v240
    %v273 = vsub.f32 0.0, %v241
    %v274 = vsub.f32 0.0, %v242
    %v275 = vsub.f32 0.0, %v243
    %v276 = vsub.f32 0.0, %v244
    %v277 = vmul.f32 %v245, 1.442695
    %v278 = vpow.pop %v277
    %v279 = vmul.f32 %v246, 1.442695
    %v280 = vpow.pop %v279
    %v281 = vmul.f32 %v247, 1.442695
    %v282 = vpow.pop %v281
    %v283 = vmul.f32 %v248, 1.442695
    %v284 = vpow.pop %v283
    %v285 = vmul.f32 %v249, 1.442695
    %v286 = vpow.pop %v285
    %v287 = vmul.f32 %v250, 1.442695
    %v288 = vpow.pop %v287
    %v289 = vmul.f32 %v251, 1.442695
    %v290 = vpow.pop %v289
    %v291 = vmul.f32 %v252, 1.442695
    %v292 = vpow.pop %v291
    %v293 = vmul.f32 %v253, 1.442695
    %v294 = vpow.pop %v293
    %v295 = vmul.f32 %v254, 1.442695
    %v296 = vpow.pop %v295
    %v297 = vmul.f32 %v255, 1.442695
    %v298 = vpow.pop %v297
    %v299 = vmul.f32 %v256, 1.442695
    %v300 = vpow.pop %v299
    %v301 = vmul.f32 %v257, 1.442695
    %v302 = vpow.pop %v301
    %v303 = vmul.f32 %v258, 1.442695
    %v304 = vpow.pop %v303
    %v305 = vmul.f32 %v259, 1.442695
    %v306 = vpow.pop %v305
    %v307 = vmul.f32 %v260, 1.442695
    %v308 = vpow.pop %v307
    %v309 = vmul.f32 %v261, 1.442695
    %v310 = vpow.pop %v309
    %v311 = vmul.f32 %v262, 1.442695
    %v312 = vpow.pop %v311
    %v313 = vmul.f32 %v263, 1.442695
    %v314 = vpow.pop %v313
    %v315 = vmul.f32 %v264, 1.442695
    %v316 = vpow.pop %v315
    %v317 = vmul.f32 %v265, 1.442695
    %v318 = vpow.pop %v317
    %v319 = vmul.f32 %v266, 1.442695
    %v320 = vpow.pop %v319
    %v321 = vmul.f32 %v267, 1.442695
    %v322 = vpow.pop %v321
    %v323 = vmul.f32 %v268, 1.442695
    %v324 = vpow.pop %v323
    %v325 = vmul.f32 %v269, 1.442695
    %v326 = vpow.pop %v325
    %v327 = vmul.f32 %v270, 1.442695
    %v328 = vpow.pop %v327
    %v329 = vmul.f32 %v271, 1.442695
    %v330 = vpow.pop %v329
    %v331 = vmul.f32 %v272, 1.442695
    %v332 = vpow.pop %v331
    %v333 = vmul.f32 %v273, 1.442695
    %v334 = vpow.pop %v333
    %v335 = vmul.f32 %v274, 1.442695
    %v336 = vpow.pop %v335
    %v337 = vmul.f32 %v275, 1.442695
    %v338 = vpow.pop %v337
    %v339 = vmul.f32 %v276, 1.442695
    %v340 = vpow.pop %v339
    %v341 = vadd.f32 %v278, 1.0
    %v342 = vlog2.pop %v341
    %v343 = vmul.f32 %v342, 0.6931472
    %v344 = vmul.f32 -0.5, %v278
    %v345 = vadd.f32 %v344, 1.0
    %v346 = vmul.f32 %v345, %v278
    %v347 = vand.u32 2147483647, %v278
    %vm348 = vcmp.lt.f32.partialorder %v347, 0.0004427343
    %v349 = vsel %vm348, %v346, %v343
    %v350 = vadd.f32 %v280, 1.0
    %v351 = vlog2.pop %v350
    %v352 = vmul.f32 %v351, 0.6931472
    %v353 = vmul.f32 -0.5, %v280
    %v354 = vadd.f32 %v353, 1.0
    %v355 = vmul.f32 %v354, %v280
    %v356 = vand.u32 2147483647, %v280
    %vm357 = vcmp.lt.f32.partialorder %v356, 0.0004427343
    %v358 = vsel %vm357, %v355, %v352
    %v359 = vadd.f32 %v282, 1.0
    %v360 = vlog2.pop %v359
    %v361 = vmul.f32 %v360, 0.6931472
    %v362 = vmul.f32 -0.5, %v282
    %v363 = vadd.f32 %v362, 1.0
    %v364 = vmul.f32 %v363, %v282
    %v365 = vand.u32 2147483647, %v282
    %vm366 = vcmp.lt.f32.partialorder %v365, 0.0004427343
    %v367 = vsel %vm366, %v364, %v361
    %v368 = vadd.f32 %v284, 1.0
    %v369 = vlog2.pop %v368
    %v370 = vmul.f32 %v369, 0.6931472
    %v371 = vmul.f32 -0.5, %v284
    %v372 = vadd.f32 %v371, 1.0
    %v373 = vmul.f32 %v372, %v284
    %v374 = vand.u32 2147483647, %v284
    %vm375 = vcmp.lt.f32.partialorder %v374, 0.0004427343
    %v376 = vsel %vm375, %v373, %v370
    %v377 = vadd.f32 %v286, 1.0
    %v378 = vlog2.pop %v377
    %v379 = vmul.f32 %v378, 0.6931472
    %v380 = vmul.f32 -0.5, %v286
    %v381 = vadd.f32 %v380, 1.0
    %v382 = vmul.f32 %v381, %v286
    %v383 = vand.u32 2147483647, %v286
    %vm384 = vcmp.lt.f32.partialorder %v383, 0.0004427343
    %v385 = vsel %vm384, %v382, %v379
    %v386 = vadd.f32 %v288, 1.0
    %v387 = vlog2.pop %v386
    %v388 = vmul.f32 %v387, 0.6931472
    %v389 = vmul.f32 -0.5, %v288
    %v390 = vadd.f32 %v389, 1.0
    %v391 = vmul.f32 %v390, %v288
    %v392 = vand.u32 2147483647, %v288
    %vm393 = vcmp.lt.f32.partialorder %v392, 0.0004427343
    %v394 = vsel %vm393, %v391, %v388
    %v395 = vadd.f32 %v290, 1.0
    %v396 = vlog2.pop %v395
    %v397 = vmul.f32 %v396, 0.6931472
    %v398 = vmul.f32 -0.5, %v290
    %v399 = vadd.f32 %v398, 1.0
    %v400 = vmul.f32 %v399, %v290
    %v401 = vand.u32 2147483647, %v290
    %vm402 = vcmp.lt.f32.partialorder %v401, 0.0004427343
    %v403 = vsel %vm402, %v400, %v397
    %v404 = vadd.f32 %v292, 1.0
    %v405 = vlog2.pop %v404
    %v406 = vmul.f32 %v405, 0.6931472
    %v407 = vmul.f32 -0.5, %v292
    %v408 = vadd.f32 %v407, 1.0
    %v409 = vmul.f32 %v408, %v292
    %v410 = vand.u32 2147483647, %v292
    %vm411 = vcmp.lt.f32.partialorder %v410, 0.0004427343
    %v412 = vsel %vm411, %v409, %v406
    %v413 = vadd.f32 %v294, 1.0
    %v414 = vlog2.pop %v413
    %v415 = vmul.f32 %v414, 0.6931472
    %v416 = vmul.f32 -0.5, %v294
    %v417 = vadd.f32 %v416, 1.0
    %v418 = vmul.f32 %v417, %v294
    %v419 = vand.u32 2147483647, %v294
    %vm420 = vcmp.lt.f32.partialorder %v419, 0.0004427343
    %v421 = vsel %vm420, %v418, %v415
    %v422 = vadd.f32 %v296, 1.0
    %v423 = vlog2.pop %v422
    %v424 = vmul.f32 %v423, 0.6931472
    %v425 = vmul.f32 -0.5, %v296
    %v426 = vadd.f32 %v425, 1.0
    %v427 = vmul.f32 %v426, %v296
    %v428 = vand.u32 2147483647, %v296
    %vm429 = vcmp.lt.f32.partialorder %v428, 0.0004427343
    %v430 = vsel %vm429, %v427, %v424
    %v431 = vadd.f32 %v298, 1.0
    %v432 = vlog2.pop %v431
    %v433 = vmul.f32 %v432, 0.6931472
    %v434 = vmul.f32 -0.5, %v298
    %v435 = vadd.f32 %v434, 1.0
    %v436 = vmul.f32 %v435, %v298
    %v437 = vand.u32 2147483647, %v298
    %vm438 = vcmp.lt.f32.partialorder %v437, 0.0004427343
    %v439 = vsel %vm438, %v436, %v433
    %v440 = vadd.f32 %v300, 1.0
    %v441 = vlog2.pop %v440
    %v442 = vmul.f32 %v441, 0.6931472
    %v443 = vmul.f32 -0.5, %v300
    %v444 = vadd.f32 %v443, 1.0
    %v445 = vmul.f32 %v444, %v300
    %v446 = vand.u32 2147483647, %v300
    %vm447 = vcmp.lt.f32.partialorder %v446, 0.0004427343
    %v448 = vsel %vm447, %v445, %v442
    %v449 = vadd.f32 %v302, 1.0
    %v450 = vlog2.pop %v449
    %v451 = vmul.f32 %v450, 0.6931472
    %v452 = vmul.f32 -0.5, %v302
    %v453 = vadd.f32 %v452, 1.0
    %v454 = vmul.f32 %v453, %v302
    %v455 = vand.u32 2147483647, %v302
    %vm456 = vcmp.lt.f32.partialorder %v455, 0.0004427343
    %v457 = vsel %vm456, %v454, %v451
    %v458 = vadd.f32 %v304, 1.0
    %v459 = vlog2.pop %v458
    %v460 = vmul.f32 %v459, 0.6931472
    %v461 = vmul.f32 -0.5, %v304
    %v462 = vadd.f32 %v461, 1.0
    %v463 = vmul.f32 %v462, %v304
    %v464 = vand.u32 2147483647, %v304
    %vm465 = vcmp.lt.f32.partialorder %v464, 0.0004427343
    %v466 = vsel %vm465, %v463, %v460
    %v467 = vadd.f32 %v306, 1.0
    %v468 = vlog2.pop %v467
    %v469 = vmul.f32 %v468, 0.6931472
    %v470 = vmul.f32 -0.5, %v306
    %v471 = vadd.f32 %v470, 1.0
    %v472 = vmul.f32 %v471, %v306
    %v473 = vand.u32 2147483647, %v306
    %vm474 = vcmp.lt.f32.partialorder %v473, 0.0004427343
    %v475 = vsel %vm474, %v472, %v469
    %v476 = vadd.f32 %v308, 1.0
    %v477 = vlog2.pop %v476
    %v478 = vmul.f32 %v477, 0.6931472
    %v479 = vmul.f32 -0.5, %v308
    %v480 = vadd.f32 %v479, 1.0
    %v481 = vmul.f32 %v480, %v308
    %v482 = vand.u32 2147483647, %v308
    %vm483 = vcmp.lt.f32.partialorder %v482, 0.0004427343
    %v484 = vsel %vm483, %v481, %v478
    %v485 = vadd.f32 %v310, 1.0
    %v486 = vlog2.pop %v485
    %v487 = vmul.f32 %v486, 0.6931472
    %v488 = vmul.f32 -0.5, %v310
    %v489 = vadd.f32 %v488, 1.0
    %v490 = vmul.f32 %v489, %v310
    %v491 = vand.u32 2147483647, %v310
    %vm492 = vcmp.lt.f32.partialorder %v491, 0.0004427343
    %v493 = vsel %vm492, %v490, %v487
    %v494 = vadd.f32 %v312, 1.0
    %v495 = vlog2.pop %v494
    %v496 = vmul.f32 %v495, 0.6931472
    %v497 = vmul.f32 -0.5, %v312
    %v498 = vadd.f32 %v497, 1.0
    %v499 = vmul.f32 %v498, %v312
    %v500 = vand.u32 2147483647, %v312
    %vm501 = vcmp.lt.f32.partialorder %v500, 0.0004427343
    %v502 = vsel %vm501, %v499, %v496
    %v503 = vadd.f32 %v314, 1.0
    %v504 = vlog2.pop %v503
    %v505 = vmul.f32 %v504, 0.6931472
    %v506 = vmul.f32 -0.5, %v314
    %v507 = vadd.f32 %v506, 1.0
    %v508 = vmul.f32 %v507, %v314
    %v509 = vand.u32 2147483647, %v314
    %vm510 = vcmp.lt.f32.partialorder %v509, 0.0004427343
    %v511 = vsel %vm510, %v508, %v505
    %v512 = vadd.f32 %v316, 1.0
    %v513 = vlog2.pop %v512
    %v514 = vmul.f32 %v513, 0.6931472
    %v515 = vmul.f32 -0.5, %v316
    %v516 = vadd.f32 %v515, 1.0
    %v517 = vmul.f32 %v516, %v316
    %v518 = vand.u32 2147483647, %v316
    %vm519 = vcmp.lt.f32.partialorder %v518, 0.0004427343
    %v520 = vsel %vm519, %v517, %v514
    %v521 = vadd.f32 %v318, 1.0
    %v522 = vlog2.pop %v521
    %v523 = vmul.f32 %v522, 0.6931472
    %v524 = vmul.f32 -0.5, %v318
    %v525 = vadd.f32 %v524, 1.0
    %v526 = vmul.f32 %v525, %v318
    %v527 = vand.u32 2147483647, %v318
    %vm528 = vcmp.lt.f32.partialorder %v527, 0.0004427343
    %v529 = vsel %vm528, %v526, %v523
    %v530 = vadd.f32 %v320, 1.0
    %v531 = vlog2.pop %v530
    %v532 = vmul.f32 %v531, 0.6931472
    %v533 = vmul.f32 -0.5, %v320
    %v534 = vadd.f32 %v533, 1.0
    %v535 = vmul.f32 %v534, %v320
    %v536 = vand.u32 2147483647, %v320
    %vm537 = vcmp.lt.f32.partialorder %v536, 0.0004427343
    %v538 = vsel %vm537, %v535, %v532
    %v539 = vadd.f32 %v322, 1.0
    %v540 = vlog2.pop %v539
    %v541 = vmul.f32 %v540, 0.6931472
    %v542 = vmul.f32 -0.5, %v322
    %v543 = vadd.f32 %v542, 1.0
    %v544 = vmul.f32 %v543, %v322
    %v545 = vand.u32 2147483647, %v322
    %vm546 = vcmp.lt.f32.partialorder %v545, 0.0004427343
    %v547 = vsel %vm546, %v544, %v541
    %v548 = vadd.f32 %v324, 1.0
    %v549 = vlog2.pop %v548
    %v550 = vmul.f32 %v549, 0.6931472
    %v551 = vmul.f32 -0.5, %v324
    %v552 = vadd.f32 %v551, 1.0
    %v553 = vmul.f32 %v552, %v324
    %v554 = vand.u32 2147483647, %v324
    %vm555 = vcmp.lt.f32.partialorder %v554, 0.0004427343
    %v556 = vsel %vm555, %v553, %v550
    %v557 = vadd.f32 %v326, 1.0
    %v558 = vlog2.pop %v557
    %v559 = vmul.f32 %v558, 0.6931472
    %v560 = vmul.f32 -0.5, %v326
    %v561 = vadd.f32 %v560, 1.0
    %v562 = vmul.f32 %v561, %v326
    %v563 = vand.u32 2147483647, %v326
    %vm564 = vcmp.lt.f32.partialorder %v563, 0.0004427343
    %v565 = vsel %vm564, %v562, %v559
    %v566 = vadd.f32 %v328, 1.0
    %v567 = vlog2.pop %v566
    %v568 = vmul.f32 %v567, 0.6931472
    %v569 = vmul.f32 -0.5, %v328
    %v570 = vadd.f32 %v569, 1.0
    %v571 = vmul.f32 %v570, %v328
    %v572 = vand.u32 2147483647, %v328
    %vm573 = vcmp.lt.f32.partialorder %v572, 0.0004427343
    %v574 = vsel %vm573, %v571, %v568
    %v575 = vadd.f32 %v330, 1.0
    %v576 = vlog2.pop %v575
    %v577 = vmul.f32 %v576, 0.6931472
    %v578 = vmul.f32 -0.5, %v330
    %v579 = vadd.f32 %v578, 1.0
    %v580 = vmul.f32 %v579, %v330
    %v581 = vand.u32 2147483647, %v330
    %vm582 = vcmp.lt.f32.partialorder %v581, 0.0004427343
    %v583 = vsel %vm582, %v580, %v577
    %v584 = vadd.f32 %v332, 1.0
    %v585 = vlog2.pop %v584
    %v586 = vmul.f32 %v585, 0.6931472
    %v587 = vmul.f32 -0.5, %v332
    %v588 = vadd.f32 %v587, 1.0
    %v589 = vmul.f32 %v588, %v332
    %v590 = vand.u32 2147483647, %v332
    %vm591 = vcmp.lt.f32.partialorder %v590, 0.0004427343
    %v592 = vsel %vm591, %v589, %v586
    %v593 = vadd.f32 %v334, 1.0
    %v594 = vlog2.pop %v593
    %v595 = vmul.f32 %v594, 0.6931472
    %v596 = vmul.f32 -0.5, %v334
    %v597 = vadd.f32 %v596, 1.0
    %v598 = vmul.f32 %v597, %v334
    %v599 = vand.u32 2147483647, %v334
    %vm600 = vcmp.lt.f32.partialorder %v599, 0.0004427343
    %v601 = vsel %vm600, %v598, %v595
    %v602 = vadd.f32 %v336, 1.0
    %v603 = vlog2.pop %v602
    %v604 = vmul.f32 %v603, 0.6931472
    %v605 = vmul.f32 -0.5, %v336
    %v606 = vadd.f32 %v605, 1.0
    %v607 = vmul.f32 %v606, %v336
    %v608 = vand.u32 2147483647, %v336
    %vm609 = vcmp.lt.f32.partialorder %v608, 0.0004427343
    %v610 = vsel %vm609, %v607, %v604
    %v611 = vadd.f32 %v338, 1.0
    %v612 = vlog2.pop %v611
    %v613 = vmul.f32 %v612, 0.6931472
    %v614 = vmul.f32 -0.5, %v338
    %v615 = vadd.f32 %v614, 1.0
    %v616 = vmul.f32 %v615, %v338
    %v617 = vand.u32 2147483647, %v338
    %vm618 = vcmp.lt.f32.partialorder %v617, 0.0004427343
    %v619 = vsel %vm618, %v616, %v613
    %v620 = vadd.f32 %v340, 1.0
    %v621 = vlog2.pop %v620
    %v622 = vmul.f32 %v621, 0.6931472
    %v623 = vmul.f32 -0.5, %v340
    %v624 = vadd.f32 %v623, 1.0
    %v625 = vmul.f32 %v624, %v340
    %v626 = vand.u32 2147483647, %v340
    %vm627 = vcmp.lt.f32.partialorder %v626, 0.0004427343
    %v628 = vsel %vm627, %v625, %v622
    %v629 = vadd.f32 %v181, %v349
    %v630 = vadd.f32 %v182, %v358
    %v631 = vadd.f32 %v183, %v367
    %v632 = vadd.f32 %v184, %v376
    %v633 = vadd.f32 %v185, %v385
    %v634 = vadd.f32 %v186, %v394
    %v635 = vadd.f32 %v187, %v403
    %v636 = vadd.f32 %v188, %v412
    %v637 = vadd.f32 %v189, %v421
    %v638 = vadd.f32 %v190, %v430
    %v639 = vadd.f32 %v191, %v439
    %v640 = vadd.f32 %v192, %v448
    %v641 = vadd.f32 %v193, %v457
    %v642 = vadd.f32 %v194, %v466
    %v643 = vadd.f32 %v195, %v475
    %v644 = vadd.f32 %v196, %v484
    %v645 = vadd.f32 %v197, %v493
    %v646 = vadd.f32 %v198, %v502
    %v647 = vadd.f32 %v199, %v511
    %v648 = vadd.f32 %v200, %v520
    %v649 = vadd.f32 %v201, %v529
    %v650 = vadd.f32 %v202, %v538
    %v651 = vadd.f32 %v203, %v547
    %v652 = vadd.f32 %v204, %v556
    %v653 = vadd.f32 %v205, %v565
    %v654 = vadd.f32 %v206, %v574
    %v655 = vadd.f32 %v207, %v583
    %v656 = vadd.f32 %v208, %v592
    %v657 = vadd.f32 %v209, %v601
    %v658 = vadd.f32 %v210, %v610
    %v659 = vadd.f32 %v211, %v619
    %v660 = vadd.f32 %v212, %v628
    %v661 = vld [vmem:[%s3] sm:$0xff]
    %v662 = vld [vmem:[%s3 + $0x8] sm:$0xff]
    %v663 = vld [vmem:[%s3 + $0x10] sm:$0xff]
    %v664 = vld [vmem:[%s3 + $0x18] sm:$0xff]
    %v665 = vld [vmem:[%s4] sm:$0xff]
    %v666 = vld [vmem:[%s4 + $0x8] sm:$0xff]
    %v667 = vld [vmem:[%s4 + $0x10] sm:$0xff]
    %v668 = vld [vmem:[%s4 + $0x18] sm:$0xff]
    %670 = vset.pattern.permute.xlu0 0
    %671 = vperm.xlu0 %670, %v665
    %v672 = vpop.permute.xlu0 %671
    %675 = vset.pattern.permute.xlu0 0
    %676 = vperm.xlu0 %675, %v666
    %v677 = vpop.permute.xlu0 %676
    %680 = vset.pattern.permute.xlu0 0
    %681 = vperm.xlu0 %680, %v667
    %v682 = vpop.permute.xlu0 %681
    %685 = vset.pattern.permute.xlu0 0
    %686 = vperm.xlu0 %685, %v668
    %v687 = vpop.permute.xlu0 %686
    %vm689 = vcmask 261120
    %v691 = vsel %vm689, %v661, 0
    %v694 = vsel %vm689, %v662, 0
    %v697 = vsel %vm689, %v663, 0
    %v700 = vsel %vm689, %v664, 0
    %702 = vmatprep.subr.mxu0 %v630
    %703 = vmatpush1.msra.mxu0 %v629
    %704 = vmatprep.subr.mxu0 %v638
    %705 = vmatpush1.msra.mxu0 %v637
    %706 = vmatprep.subr.mxu0 %v646
    %707 = vmatpush1.msra.mxu0 %v645
    %708 = vmatprep.subr.mxu0 %v654
    %709 = vmatpush1.msra.mxu0 %v653
    %710 = vmatprep.subr.mxu0 0.0
    %711 = vmatpush1.msra.mxu0 0.0
    %712 = vmatprep.subr.mxu0 0.0
    %713 = vmatpush1.msra.mxu0 0.0
    %714 = vmatprep.subr.mxu0 0.0
    %715 = vmatpush1.msra.mxu0 0.0
    %716 = vmatprep.subr.mxu0 0.0
    %717 = vmatpush1.msra.mxu0 0.0
    %718 = vmatprep.subr.mxu0 0.0
    %719 = vmatpush1.msra.mxu0 0.0
    %720 = vmatprep.subr.mxu0 0.0
    %721 = vmatpush1.msra.mxu0 0.0
    %722 = vmatprep.subr.mxu0 0.0
    %723 = vmatpush1.msra.mxu0 0.0
    %724 = vmatprep.subr.mxu0 0.0
    %725 = vmatpush1.msra.mxu0 0.0
    %726 = vmatprep.subr.mxu0 0.0
    %727 = vmatpush1.msra.mxu0 0.0
    %728 = vmatprep.subr.mxu0 0.0
    %729 = vmatpush1.msra.mxu0 0.0
    %730 = vmatprep.subr.mxu0 0.0
    %731 = vmatpush1.msra.mxu0 0.0
    %732 = vmatprep.subr.mxu0 0.0
    %733 = vmatpush1.msra.mxu0 0.0
    %734 = vmatprep.subr.mxu0 0.0
    %735 = vmatpush1.msra.mxu0 0.0
    %736 = vmatprep.subr.mxu0 0.0
    %737 = vmatpush1.msra.mxu0 0.0
    %738 = vmatprep.subr.mxu0 0.0
    %739 = vmatpush1.msra.mxu0 0.0
    %740 = vmatprep.subr.mxu0 0.0
    %741 = vmatpush1.msra.mxu0 0.0
    %742 = vmatprep.subr.mxu0 0.0
    %743 = vmatpush1.msra.mxu0 0.0
    %744 = vmatprep.subr.mxu0 0.0
    %745 = vmatpush1.msra.mxu0 0.0
    %746 = vmatprep.subr.mxu0 0.0
    %747 = vmatpush1.msra.mxu0 0.0
    %748 = vmatprep.subr.mxu0 0.0
    %749 = vmatpush1.msra.mxu0 0.0
    %750 = vmatprep.subr.mxu0 0.0
    %751 = vmatpush1.msra.mxu0 0.0
    %752 = vmatprep.subr.mxu0 0.0
    %753 = vmatpush1.msra.mxu0 0.0
    %754 = vmatprep.subr.mxu0 0.0
    %755 = vmatpush1.msra.mxu0 0.0
    %756 = vmatprep.subr.mxu0 0.0
    %757 = vmatpush1.msra.mxu0 0.0
    %758 = vmatprep.subr.mxu0 0.0
    %759 = vmatpush1.msra.mxu0 0.0
    %760 = vmatprep.subr.mxu0 0.0
    %761 = vmatpush1.msra.mxu0 0.0
    %762 = vmatprep.subr.mxu0 0.0
    %763 = vmatpush1.msra.mxu0 0.0
    %764 = vmatprep.subr.mxu0 0.0
    %765 = vmatpush1.msra.mxu0 0.0
    %766 = vmatprep.mubr.f32.mxu0 0.0
    %767 = vmatmul.mubr.f32.gmra.mrb[0].mxu0 %v691
    %v768 = vpop.f32.mrb[0].mxu0
    %v769 = vadd.f32 %v672, %v768
    %v770 = vpop.f32.mrb[0].mxu0
    %v771 = vadd.f32 %v672, %v770
    %772 = vmatprep.mubr.f32.mxu0 0.0
    %773 = vmatmul.mubr.f32.gmra.mrb[0].mxu0 %v694
    %v774 = vpop.f32.mrb[0].mxu0
    %v775 = vadd.f32 %v677, %v774
    %v776 = vpop.f32.mrb[0].mxu0
    %v777 = vadd.f32 %v677, %v776
    %778 = vmatprep.mubr.f32.mxu0 0.0
    %779 = vmatmul.mubr.f32.gmra.mrb[0].mxu0 %v697
    %v780 = vpop.f32.mrb[0].mxu0
    %v781 = vadd.f32 %v682, %v780
    %v782 = vpop.f32.mrb[0].mxu0
    %v783 = vadd.f32 %v682, %v782
    %784 = vmatprep.mubr.f32.mxu0 0.0
    %785 = vmatmul.mubr.f32.gmra.mrb[0].mxu0 %v700
    %v786 = vpop.f32.mrb[0].mxu0
    %v787 = vadd.f32 %v687, %v786
    %v788 = vpop.f32.mrb[0].mxu0
    %v789 = vadd.f32 %v687, %v788
    %790 = vdwg.mxu0
    %791 = vmatprep.subr.mxu0 %v632
    %792 = vmatpush1.msra.mxu0 %v631
    %793 = vmatprep.subr.mxu0 %v640
    %794 = vmatpush1.msra.mxu0 %v639
    %795 = vmatprep.subr.mxu0 %v648
    %796 = vmatpush1.msra.mxu0 %v647
    %797 = vmatprep.subr.mxu0 %v656
    %798 = vmatpush1.msra.mxu0 %v655
    %799 = vmatprep.subr.mxu0 0.0
    %800 = vmatpush1.msra.mxu0 0.0
    %801 = vmatprep.subr.mxu0 0.0
    %802 = vmatpush1.msra.mxu0 0.0
    %803 = vmatprep.subr.mxu0 0.0
    %804 = vmatpush1.msra.mxu0 0.0
    %805 = vmatprep.subr.mxu0 0.0
    %806 = vmatpush1.msra.mxu0 0.0
    %807 = vmatprep.subr.mxu0 0.0
    %808 = vmatpush1.msra.mxu0 0.0
    %809 = vmatprep.subr.mxu0 0.0
    %810 = vmatpush1.msra.mxu0 0.0
    %811 = vmatprep.subr.mxu0 0.0
    %812 = vmatpush1.msra.mxu0 0.0
    %813 = vmatprep.subr.mxu0 0.0
    %814 = vmatpush1.msra.mxu0 0.0
    %815 = vmatprep.subr.mxu0 0.0
    %816 = vmatpush1.msra.mxu0 0.0
    %817 = vmatprep.subr.mxu0 0.0
    %818 = vmatpush1.msra.mxu0 0.0
    %819 = vmatprep.subr.mxu0 0.0
    %820 = vmatpush1.msra.mxu0 0.0
    %821 = vmatprep.subr.mxu0 0.0
    %822 = vmatpush1.msra.mxu0 0.0
    %823 = vmatprep.subr.mxu0 0.0
    %824 = vmatpush1.msra.mxu0 0.0
    %825 = vmatprep.subr.mxu0 0.0
    %826 = vmatpush1.msra.mxu0 0.0
    %827 = vmatprep.subr.mxu0 0.0
    %828 = vmatpush1.msra.mxu0 0.0
    %829 = vmatprep.subr.mxu0 0.0
    %830 = vmatpush1.msra.mxu0 0.0
    %831 = vmatprep.subr.mxu0 0.0
    %832 = vmatpush1.msra.mxu0 0.0
    %833 = vmatprep.subr.mxu0 0.0
    %834 = vmatpush1.msra.mxu0 0.0
    %835 = vmatprep.subr.mxu0 0.0
    %836 = vmatpush1.msra.mxu0 0.0
    %837 = vmatprep.subr.mxu0 0.0
    %838 = vmatpush1.msra.mxu0 0.0
    %839 = vmatprep.subr.mxu0 0.0
    %840 = vmatpush1.msra.mxu0 0.0
    %841 = vmatprep.subr.mxu0 0.0
    %842 = vmatpush1.msra.mxu0 0.0
    %843 = vmatprep.subr.mxu0 0.0
    %844 = vmatpush1.msra.mxu0 0.0
    %845 = vmatprep.subr.mxu0 0.0
    %846 = vmatpush1.msra.mxu0 0.0
    %847 = vmatprep.subr.mxu0 0.0
    %848 = vmatpush1.msra.mxu0 0.0
    %849 = vmatprep.subr.mxu0 0.0
    %850 = vmatpush1.msra.mxu0 0.0
    %851 = vmatprep.subr.mxu0 0.0
    %852 = vmatpush1.msra.mxu0 0.0
    %853 = vmatprep.subr.mxu0 0.0
    %854 = vmatpush1.msra.mxu0 0.0
    %855 = vmatprep.mubr.f32.mxu0 0.0
    %856 = vmatmul.mubr.f32.gmra.mrb[0].mxu0 %v691
    %v857 = vpop.f32.mrb[0].mxu0
    %v858 = vadd.f32 %v672, %v857
    %v859 = vpop.f32.mrb[0].mxu0
    %v860 = vadd.f32 %v672, %v859
    %861 = vmatprep.mubr.f32.mxu0 0.0
    %862 = vmatmul.mubr.f32.gmra.mrb[0].mxu0 %v694
    %v863 = vpop.f32.mrb[0].mxu0
    %v864 = vadd.f32 %v677, %v863
    %v865 = vpop.f32.mrb[0].mxu0
    %v866 = vadd.f32 %v677, %v865
    %867 = vmatprep.mubr.f32.mxu0 0.0
    %868 = vmatmul.mubr.f32.gmra.mrb[0].mxu0 %v697
    %v869 = vpop.f32.mrb[0].mxu0
    %v870 = vadd.f32 %v682, %v869
    %v871 = vpop.f32.mrb[0].mxu0
    %v872 = vadd.f32 %v682, %v871
    %873 = vmatprep.mubr.f32.mxu0 0.0
    %874 = vmatmul.mubr.f32.gmra.mrb[0].mxu0 %v700
    %v875 = vpop.f32.mrb[0].mxu0
    %v876 = vadd.f32 %v687, %v875
    %v877 = vpop.f32.mrb[0].mxu0
    %v878 = vadd.f32 %v687, %v877
    %879 = vdwg.mxu0
    %880 = vmatprep.subr.mxu0 %v634
    %881 = vmatpush1.msra.mxu0 %v633
    %882 = vmatprep.subr.mxu0 %v642
    %883 = vmatpush1.msra.mxu0 %v641
    %884 = vmatprep.subr.mxu0 %v650
    %885 = vmatpush1.msra.mxu0 %v649
    %886 = vmatprep.subr.mxu0 %v658
    %887 = vmatpush1.msra.mxu0 %v657
    %888 = vmatprep.subr.mxu0 0.0
    %889 = vmatpush1.msra.mxu0 0.0
    %890 = vmatprep.subr.mxu0 0.0
    %891 = vmatpush1.msra.mxu0 0.0
    %892 = vmatprep.subr.mxu0 0.0
    %893 = vmatpush1.msra.mxu0 0.0
    %894 = vmatprep.subr.mxu0 0.0
    %895 = vmatpush1.msra.mxu0 0.0
    %896 = vmatprep.subr.mxu0 0.0
    %897 = vmatpush1.msra.mxu0 0.0
    %898 = vmatprep.subr.mxu0 0.0
    %899 = vmatpush1.msra.mxu0 0.0
    %900 = vmatprep.subr.mxu0 0.0
    %901 = vmatpush1.msra.mxu0 0.0
    %902 = vmatprep.subr.mxu0 0.0
    %903 = vmatpush1.msra.mxu0 0.0
    %904 = vmatprep.subr.mxu0 0.0
    %905 = vmatpush1.msra.mxu0 0.0
    %906 = vmatprep.subr.mxu0 0.0
    %907 = vmatpush1.msra.mxu0 0.0
    %908 = vmatprep.subr.mxu0 0.0
    %909 = vmatpush1.msra.mxu0 0.0
    %910 = vmatprep.subr.mxu0 0.0
    %911 = vmatpush1.msra.mxu0 0.0
    %912 = vmatprep.subr.mxu0 0.0
    %913 = vmatpush1.msra.mxu0 0.0
    %914 = vmatprep.subr.mxu0 0.0
    %915 = vmatpush1.msra.mxu0 0.0
    %916 = vmatprep.subr.mxu0 0.0
    %917 = vmatpush1.msra.mxu0 0.0
    %918 = vmatprep.subr.mxu0 0.0
    %919 = vmatpush1.msra.mxu0 0.0
    %920 = vmatprep.subr.mxu0 0.0
    %921 = vmatpush1.msra.mxu0 0.0
    %922 = vmatprep.subr.mxu0 0.0
    %923 = vmatpush1.msra.mxu0 0.0
    %924 = vmatprep.subr.mxu0 0.0
    %925 = vmatpush1.msra.mxu0 0.0
    %926 = vmatprep.subr.mxu0 0.0
    %927 = vmatpush1.msra.mxu0 0.0
    %928 = vmatprep.subr.mxu0 0.0
    %929 = vmatpush1.msra.mxu0 0.0
    %930 = vmatprep.subr.mxu0 0.0
    %931 = vmatpush1.msra.mxu0 0.0
    %932 = vmatprep.subr.mxu0 0.0
    %933 = vmatpush1.msra.mxu0 0.0
    %934 = vmatprep.subr.mxu0 0.0
    %935 = vmatpush1.msra.mxu0 0.0
    %936 = vmatprep.subr.mxu0 0.0
    %937 = vmatpush1.msra.mxu0 0.0
    %938 = vmatprep.subr.mxu0 0.0
    %939 = vmatpush1.msra.mxu0 0.0
    %940 = vmatprep.subr.mxu0 0.0
    %941 = vmatpush1.msra.mxu0 0.0
    %942 = vmatprep.subr.mxu0 0.0
    %943 = vmatpush1.msra.mxu0 0.0
    %944 = vmatprep.mubr.f32.mxu0 0.0
    %945 = vmatmul.mubr.f32.gmra.mrb[0].mxu0 %v691
    %v946 = vpop.f32.mrb[0].mxu0
    %v947 = vadd.f32 %v672, %v946
    %v948 = vpop.f32.mrb[0].mxu0
    %v949 = vadd.f32 %v672, %v948
    %950 = vmatprep.mubr.f32.mxu0 0.0
    %951 = vmatmul.mubr.f32.gmra.mrb[0].mxu0 %v694
    %v952 = vpop.f32.mrb[0].mxu0
    %v953 = vadd.f32 %v677, %v952
    %v954 = vpop.f32.mrb[0].mxu0
    %v955 = vadd.f32 %v677, %v954
    %956 = vmatprep.mubr.f32.mxu0 0.0
    %957 = vmatmul.mubr.f32.gmra.mrb[0].mxu0 %v697
    %v958 = vpop.f32.mrb[0].mxu0
    %v959 = vadd.f32 %v682, %v958
    %v960 = vpop.f32.mrb[0].mxu0
    %v961 = vadd.f32 %v682, %v960
    %962 = vmatprep.mubr.f32.mxu0 0.0
    %963 = vmatmul.mubr.f32.gmra.mrb[0].mxu0 %v700
    %v964 = vpop.f32.mrb[0].mxu0
    %v965 = vadd.f32 %v687, %v964
    %v966 = vpop.f32.mrb[0].mxu0
    %v967 = vadd.f32 %v687, %v966
    %968 = vdwg.mxu0
    %969 = vmatprep.subr.mxu0 %v636
    %970 = vmatpush1.msra.mxu0 %v635
    %971 = vmatprep.subr.mxu0 %v644
    %972 = vmatpush1.msra.mxu0 %v643
    %973 = vmatprep.subr.mxu0 %v652
    %974 = vmatpush1.msra.mxu0 %v651
    %975 = vmatprep.subr.mxu0 %v660
    %976 = vmatpush1.msra.mxu0 %v659
    %977 = vmatprep.subr.mxu0 0.0
    %978 = vmatpush1.msra.mxu0 0.0
    %979 = vmatprep.subr.mxu0 0.0
    %980 = vmatpush1.msra.mxu0 0.0
    %981 = vmatprep.subr.mxu0 0.0
    %982 = vmatpush1.msra.mxu0 0.0
    %983 = vmatprep.subr.mxu0 0.0
    %984 = vmatpush1.msra.mxu0 0.0
    %985 = vmatprep.subr.mxu0 0.0
    %986 = vmatpush1.msra.mxu0 0.0
    %987 = vmatprep.subr.mxu0 0.0
    %988 = vmatpush1.msra.mxu0 0.0
    %989 = vmatprep.subr.mxu0 0.0
    %990 = vmatpush1.msra.mxu0 0.0
    %991 = vmatprep.subr.mxu0 0.0
    %992 = vmatpush1.msra.mxu0 0.0
    %993 = vmatprep.subr.mxu0 0.0
    %994 = vmatpush1.msra.mxu0 0.0
    %995 = vmatprep.subr.mxu0 0.0
    %996 = vmatpush1.msra.mxu0 0.0
    %997 = vmatprep.subr.mxu0 0.0
    %998 = vmatpush1.msra.mxu0 0.0
    %999 = vmatprep.subr.mxu0 0.0
    %1000 = vmatpush1.msra.mxu0 0.0
    %1001 = vmatprep.subr.mxu0 0.0
    %1002 = vmatpush1.msra.mxu0 0.0
    %1003 = vmatprep.subr.mxu0 0.0
    %1004 = vmatpush1.msra.mxu0 0.0
    %1005 = vmatprep.subr.mxu0 0.0
    %1006 = vmatpush1.msra.mxu0 0.0
    %1007 = vmatprep.subr.mxu0 0.0
    %1008 = vmatpush1.msra.mxu0 0.0
    %1009 = vmatprep.subr.mxu0 0.0
    %1010 = vmatpush1.msra.mxu0 0.0
    %1011 = vmatprep.subr.mxu0 0.0
    %1012 = vmatpush1.msra.mxu0 0.0
    %1013 = vmatprep.subr.mxu0 0.0
    %1014 = vmatpush1.msra.mxu0 0.0
    %1015 = vmatprep.subr.mxu0 0.0
    %1016 = vmatpush1.msra.mxu0 0.0
    %1017 = vmatprep.subr.mxu0 0.0
    %1018 = vmatpush1.msra.mxu0 0.0
    %1019 = vmatprep.subr.mxu0 0.0
    %1020 = vmatpush1.msra.mxu0 0.0
    %1021 = vmatprep.subr.mxu0 0.0
    %1022 = vmatpush1.msra.mxu0 0.0
    %1023 = vmatprep.subr.mxu0 0.0
    %1024 = vmatpush1.msra.mxu0 0.0
    %1025 = vmatprep.subr.mxu0 0.0
    %1026 = vmatpush1.msra.mxu0 0.0
    %1027 = vmatprep.subr.mxu0 0.0
    %1028 = vmatpush1.msra.mxu0 0.0
    %1029 = vmatprep.subr.mxu0 0.0
    %1030 = vmatpush1.msra.mxu0 0.0
    %1031 = vmatprep.subr.mxu0 0.0
    %1032 = vmatpush1.msra.mxu0 0.0
    %1033 = vmatprep.mubr.f32.mxu0 0.0
    %1034 = vmatmul.mubr.f32.gmra.mrb[0].mxu0 %v691
    %v1035 = vpop.f32.mrb[0].mxu0
    %v1036 = vadd.f32 %v672, %v1035
    %v1037 = vpop.f32.mrb[0].mxu0
    %v1038 = vadd.f32 %v672, %v1037
    %1039 = vmatprep.mubr.f32.mxu0 0.0
    %1040 = vmatmul.mubr.f32.gmra.mrb[0].mxu0 %v694
    %v1041 = vpop.f32.mrb[0].mxu0
    %v1042 = vadd.f32 %v677, %v1041
    %v1043 = vpop.f32.mrb[0].mxu0
    %v1044 = vadd.f32 %v677, %v1043
    %1045 = vmatprep.mubr.f32.mxu0 0.0
    %1046 = vmatmul.mubr.f32.gmra.mrb[0].mxu0 %v697
    %v1047 = vpop.f32.mrb[0].mxu0
    %v1048 = vadd.f32 %v682, %v1047
    %v1049 = vpop.f32.mrb[0].mxu0
    %v1050 = vadd.f32 %v682, %v1049
    %1051 = vmatprep.mubr.f32.mxu0 0.0
    %1052 = vmatmul.mubr.f32.gmra.mrb[0].mxu0 %v700
    %v1053 = vpop.f32.mrb[0].mxu0
    %v1054 = vadd.f32 %v687, %v1053
    %v1055 = vpop.f32.mrb[0].mxu0
    %v1056 = vadd.f32 %v687, %v1055
    %1057 = vdwg.mxu0
    %v1058 = vmax.f32 %v769, 0.0
    %v1059 = vmax.f32 %v771, 0.0
    %v1060 = vmax.f32 %v858, 0.0
    %v1061 = vmax.f32 %v860, 0.0
    %v1062 = vmax.f32 %v947, 0.0
    %v1063 = vmax.f32 %v949, 0.0
    %v1064 = vmax.f32 %v1036, 0.0
    %v1065 = vmax.f32 %v1038, 0.0
    %v1066 = vmax.f32 %v775, 0.0
    %v1067 = vmax.f32 %v777, 0.0
    %v1068 = vmax.f32 %v864, 0.0
    %v1069 = vmax.f32 %v866, 0.0
    %v1070 = vmax.f32 %v953, 0.0
    %v1071 = vmax.f32 %v955, 0.0
    %v1072 = vmax.f32 %v1042, 0.0
    %v1073 = vmax.f32 %v1044, 0.0
    %v1074 = vmax.f32 %v781, 0.0
    %v1075 = vmax.f32 %v783, 0.0
    %v1076 = vmax.f32 %v870, 0.0
    %v1077 = vmax.f32 %v872, 0.0
    %v1078 = vmax.f32 %v959, 0.0
    %v1079 = vmax.f32 %v961, 0.0
    %v1080 = vmax.f32 %v1048, 0.0
    %v1081 = vmax.f32 %v1050, 0.0
    %v1082 = vmax.f32 %v787, 0.0
    %v1083 = vmax.f32 %v789, 0.0
    %v1084 = vmax.f32 %v876, 0.0
    %v1085 = vmax.f32 %v878, 0.0
    %v1086 = vmax.f32 %v965, 0.0
    %v1087 = vmax.f32 %v967, 0.0
    %v1088 = vmax.f32 %v1054, 0.0
    %v1089 = vmax.f32 %v1056, 0.0
    %v1090 = vand.u32 2147483647, %v769
    %v1091 = vand.u32 2147483647, %v771
    %v1092 = vand.u32 2147483647, %v858
    %v1093 = vand.u32 2147483647, %v860
    %v1094 = vand.u32 2147483647, %v947
    %v1095 = vand.u32 2147483647, %v949
    %v1096 = vand.u32 2147483647, %v1036
    %v1097 = vand.u32 2147483647, %v1038
    %v1098 = vand.u32 2147483647, %v775
    %v1099 = vand.u32 2147483647, %v777
    %v1100 = vand.u32 2147483647, %v864
    %v1101 = vand.u32 2147483647, %v866
    %v1102 = vand.u32 2147483647, %v953
    %v1103 = vand.u32 2147483647, %v955
    %v1104 = vand.u32 2147483647, %v1042
    %v1105 = vand.u32 2147483647, %v1044
    %v1106 = vand.u32 2147483647, %v781
    %v1107 = vand.u32 2147483647, %v783
    %v1108 = vand.u32 2147483647, %v870
    %v1109 = vand.u32 2147483647, %v872
    %v1110 = vand.u32 2147483647, %v959
    %v1111 = vand.u32 2147483647, %v961
    %v1112 = vand.u32 2147483647, %v1048
    %v1113 = vand.u32 2147483647, %v1050
    %v1114 = vand.u32 2147483647, %v787
    %v1115 = vand.u32 2147483647, %v789
    %v1116 = vand.u32 2147483647, %v876
    %v1117 = vand.u32 2147483647, %v878
    %v1118 = vand.u32 2147483647, %v965
    %v1119 = vand.u32 2147483647, %v967
    %v1120 = vand.u32 2147483647, %v1054
    %v1121 = vand.u32 2147483647, %v1056
    %v1122 = vsub.f32 0.0, %v1090
    %v1123 = vsub.f32 0.0, %v1091
    %v1124 = vsub.f32 0.0, %v1092
    %v1125 = vsub.f32 0.0, %v1093
    %v1126 = vsub.f32 0.0, %v1094
    %v1127 = vsub.f32 0.0, %v1095
    %v1128 = vsub.f32 0.0, %v1096
    %v1129 = vsub.f32 0.0, %v1097
    %v1130 = vsub.f32 0.0, %v1098
    %v1131 = vsub.f32 0.0, %v1099
    %v1132 = vsub.f32 0.0, %v1100
    %v1133 = vsub.f32 0.0, %v1101
    %v1134 = vsub.f32 0.0, %v1102
    %v1135 = vsub.f32 0.0, %v1103
    %v1136 = vsub.f32 0.0, %v1104
    %v1137 = vsub.f32 0.0, %v1105
    %v1138 = vsub.f32 0.0, %v1106
    %v1139 = vsub.f32 0.0, %v1107
    %v1140 = vsub.f32 0.0, %v1108
    %v1141 = vsub.f32 0.0, %v1109
    %v1142 = vsub.f32 0.0, %v1110
    %v1143 = vsub.f32 0.0, %v1111
    %v1144 = vsub.f32 0.0, %v1112
    %v1145 = vsub.f32 0.0, %v1113
    %v1146 = vsub.f32 0.0, %v1114
    %v1147 = vsub.f32 0.0, %v1115
    %v1148 = vsub.f32 0.0, %v1116
    %v1149 = vsub.f32 0.0, %v1117
    %v1150 = vsub.f32 0.0, %v1118
    %v1151 = vsub.f32 0.0, %v1119
    %v1152 = vsub.f32 0.0, %v1120
    %v1153 = vsub.f32 0.0, %v1121
    %v1154 = vmul.f32 %v1122, 1.442695
    %v1155 = vpow.pop %v1154
    %v1156 = vmul.f32 %v1123, 1.442695
    %v1157 = vpow.pop %v1156
    %v1158 = vmul.f32 %v1124, 1.442695
    %v1159 = vpow.pop %v1158
    %v1160 = vmul.f32 %v1125, 1.442695
    %v1161 = vpow.pop %v1160
    %v1162 = vmul.f32 %v1126, 1.442695
    %v1163 = vpow.pop %v1162
    %v1164 = vmul.f32 %v1127, 1.442695
    %v1165 = vpow.pop %v1164
    %v1166 = vmul.f32 %v1128, 1.442695
    %v1167 = vpow.pop %v1166
    %v1168 = vmul.f32 %v1129, 1.442695
    %v1169 = vpow.pop %v1168
    %v1170 = vmul.f32 %v1130, 1.442695
    %v1171 = vpow.pop %v1170
    %v1172 = vmul.f32 %v1131, 1.442695
    %v1173 = vpow.pop %v1172
    %v1174 = vmul.f32 %v1132, 1.442695
    %v1175 = vpow.pop %v1174
    %v1176 = vmul.f32 %v1133, 1.442695
    %v1177 = vpow.pop %v1176
    %v1178 = vmul.f32 %v1134, 1.442695
    %v1179 = vpow.pop %v1178
    %v1180 = vmul.f32 %v1135, 1.442695
    %v1181 = vpow.pop %v1180
    %v1182 = vmul.f32 %v1136, 1.442695
    %v1183 = vpow.pop %v1182
    %v1184 = vmul.f32 %v1137, 1.442695
    %v1185 = vpow.pop %v1184
    %v1186 = vmul.f32 %v1138, 1.442695
    %v1187 = vpow.pop %v1186
    %v1188 = vmul.f32 %v1139, 1.442695
    %v1189 = vpow.pop %v1188
    %v1190 = vmul.f32 %v1140, 1.442695
    %v1191 = vpow.pop %v1190
    %v1192 = vmul.f32 %v1141, 1.442695
    %v1193 = vpow.pop %v1192
    %v1194 = vmul.f32 %v1142, 1.442695
    %v1195 = vpow.pop %v1194
    %v1196 = vmul.f32 %v1143, 1.442695
    %v1197 = vpow.pop %v1196
    %v1198 = vmul.f32 %v1144, 1.442695
    %v1199 = vpow.pop %v1198
    %v1200 = vmul.f32 %v1145, 1.442695
    %v1201 = vpow.pop %v1200
    %v1202 = vmul.f32 %v1146, 1.442695
    %v1203 = vpow.pop %v1202
    %v1204 = vmul.f32 %v1147, 1.442695
    %v1205 = vpow.pop %v1204
    %v1206 = vmul.f32 %v1148, 1.442695
    %v1207 = vpow.pop %v1206
    %v1208 = vmul.f32 %v1149, 1.442695
    %v1209 = vpow.pop %v1208
    %v1210 = vmul.f32 %v1150, 1.442695
    %v1211 = vpow.pop %v1210
    %v1212 = vmul.f32 %v1151, 1.442695
    %v1213 = vpow.pop %v1212
    %v1214 = vmul.f32 %v1152, 1.442695
    %v1215 = vpow.pop %v1214
    %v1216 = vmul.f32 %v1153, 1.442695
    %v1217 = vpow.pop %v1216
    %v1218 = vadd.f32 %v1155, 1.0
    %v1219 = vlog2.pop %v1218
    %v1220 = vmul.f32 %v1219, 0.6931472
    %v1221 = vmul.f32 -0.5, %v1155
    %v1222 = vadd.f32 %v1221, 1.0
    %v1223 = vmul.f32 %v1222, %v1155
    %v1224 = vand.u32 2147483647, %v1155
    %vm1225 = vcmp.lt.f32.partialorder %v1224, 0.0004427343
    %v1226 = vsel %vm1225, %v1223, %v1220
    %v1227 = vadd.f32 %v1157, 1.0
    %v1228 = vlog2.pop %v1227
    %v1229 = vmul.f32 %v1228, 0.6931472
    %v1230 = vmul.f32 -0.5, %v1157
    %v1231 = vadd.f32 %v1230, 1.0
    %v1232 = vmul.f32 %v1231, %v1157
    %v1233 = vand.u32 2147483647, %v1157
    %vm1234 = vcmp.lt.f32.partialorder %v1233, 0.0004427343
    %v1235 = vsel %vm1234, %v1232, %v1229
    %v1236 = vadd.f32 %v1159, 1.0
    %v1237 = vlog2.pop %v1236
    %v1238 = vmul.f32 %v1237, 0.6931472
    %v1239 = vmul.f32 -0.5, %v1159
    %v1240 = vadd.f32 %v1239, 1.0
    %v1241 = vmul.f32 %v1240, %v1159
    %v1242 = vand.u32 2147483647, %v1159
    %vm1243 = vcmp.lt.f32.partialorder %v1242, 0.0004427343
    %v1244 = vsel %vm1243, %v1241, %v1238
    %v1245 = vadd.f32 %v1161, 1.0
    %v1246 = vlog2.pop %v1245
    %v1247 = vmul.f32 %v1246, 0.6931472
    %v1248 = vmul.f32 -0.5, %v1161
    %v1249 = vadd.f32 %v1248, 1.0
    %v1250 = vmul.f32 %v1249, %v1161
    %v1251 = vand.u32 2147483647, %v1161
    %vm1252 = vcmp.lt.f32.partialorder %v1251, 0.0004427343
    %v1253 = vsel %vm1252, %v1250, %v1247
    %v1254 = vadd.f32 %v1163, 1.0
    %v1255 = vlog2.pop %v1254
    %v1256 = vmul.f32 %v1255, 0.6931472
    %v1257 = vmul.f32 -0.5, %v1163
    %v1258 = vadd.f32 %v1257, 1.0
    %v1259 = vmul.f32 %v1258, %v1163
    %v1260 = vand.u32 2147483647, %v1163
    %vm1261 = vcmp.lt.f32.partialorder %v1260, 0.0004427343
    %v1262 = vsel %vm1261, %v1259, %v1256
    %v1263 = vadd.f32 %v1165, 1.0
    %v1264 = vlog2.pop %v1263
    %v1265 = vmul.f32 %v1264, 0.6931472
    %v1266 = vmul.f32 -0.5, %v1165
    %v1267 = vadd.f32 %v1266, 1.0
    %v1268 = vmul.f32 %v1267, %v1165
    %v1269 = vand.u32 2147483647, %v1165
    %vm1270 = vcmp.lt.f32.partialorder %v1269, 0.0004427343
    %v1271 = vsel %vm1270, %v1268, %v1265
    %v1272 = vadd.f32 %v1167, 1.0
    %v1273 = vlog2.pop %v1272
    %v1274 = vmul.f32 %v1273, 0.6931472
    %v1275 = vmul.f32 -0.5, %v1167
    %v1276 = vadd.f32 %v1275, 1.0
    %v1277 = vmul.f32 %v1276, %v1167
    %v1278 = vand.u32 2147483647, %v1167
    %vm1279 = vcmp.lt.f32.partialorder %v1278, 0.0004427343
    %v1280 = vsel %vm1279, %v1277, %v1274
    %v1281 = vadd.f32 %v1169, 1.0
    %v1282 = vlog2.pop %v1281
    %v1283 = vmul.f32 %v1282, 0.6931472
    %v1284 = vmul.f32 -0.5, %v1169
    %v1285 = vadd.f32 %v1284, 1.0
    %v1286 = vmul.f32 %v1285, %v1169
    %v1287 = vand.u32 2147483647, %v1169
    %vm1288 = vcmp.lt.f32.partialorder %v1287, 0.0004427343
    %v1289 = vsel %vm1288, %v1286, %v1283
    %v1290 = vadd.f32 %v1171, 1.0
    %v1291 = vlog2.pop %v1290
    %v1292 = vmul.f32 %v1291, 0.6931472
    %v1293 = vmul.f32 -0.5, %v1171
    %v1294 = vadd.f32 %v1293, 1.0
    %v1295 = vmul.f32 %v1294, %v1171
    %v1296 = vand.u32 2147483647, %v1171
    %vm1297 = vcmp.lt.f32.partialorder %v1296, 0.0004427343
    %v1298 = vsel %vm1297, %v1295, %v1292
    %v1299 = vadd.f32 %v1173, 1.0
    %v1300 = vlog2.pop %v1299
    %v1301 = vmul.f32 %v1300, 0.6931472
    %v1302 = vmul.f32 -0.5, %v1173
    %v1303 = vadd.f32 %v1302, 1.0
    %v1304 = vmul.f32 %v1303, %v1173
    %v1305 = vand.u32 2147483647, %v1173
    %vm1306 = vcmp.lt.f32.partialorder %v1305, 0.0004427343
    %v1307 = vsel %vm1306, %v1304, %v1301
    %v1308 = vadd.f32 %v1175, 1.0
    %v1309 = vlog2.pop %v1308
    %v1310 = vmul.f32 %v1309, 0.6931472
    %v1311 = vmul.f32 -0.5, %v1175
    %v1312 = vadd.f32 %v1311, 1.0
    %v1313 = vmul.f32 %v1312, %v1175
    %v1314 = vand.u32 2147483647, %v1175
    %vm1315 = vcmp.lt.f32.partialorder %v1314, 0.0004427343
    %v1316 = vsel %vm1315, %v1313, %v1310
    %v1317 = vadd.f32 %v1177, 1.0
    %v1318 = vlog2.pop %v1317
    %v1319 = vmul.f32 %v1318, 0.6931472
    %v1320 = vmul.f32 -0.5, %v1177
    %v1321 = vadd.f32 %v1320, 1.0
    %v1322 = vmul.f32 %v1321, %v1177
    %v1323 = vand.u32 2147483647, %v1177
    %vm1324 = vcmp.lt.f32.partialorder %v1323, 0.0004427343
    %v1325 = vsel %vm1324, %v1322, %v1319
    %v1326 = vadd.f32 %v1179, 1.0
    %v1327 = vlog2.pop %v1326
    %v1328 = vmul.f32 %v1327, 0.6931472
    %v1329 = vmul.f32 -0.5, %v1179
    %v1330 = vadd.f32 %v1329, 1.0
    %v1331 = vmul.f32 %v1330, %v1179
    %v1332 = vand.u32 2147483647, %v1179
    %vm1333 = vcmp.lt.f32.partialorder %v1332, 0.0004427343
    %v1334 = vsel %vm1333, %v1331, %v1328
    %v1335 = vadd.f32 %v1181, 1.0
    %v1336 = vlog2.pop %v1335
    %v1337 = vmul.f32 %v1336, 0.6931472
    %v1338 = vmul.f32 -0.5, %v1181
    %v1339 = vadd.f32 %v1338, 1.0
    %v1340 = vmul.f32 %v1339, %v1181
    %v1341 = vand.u32 2147483647, %v1181
    %vm1342 = vcmp.lt.f32.partialorder %v1341, 0.0004427343
    %v1343 = vsel %vm1342, %v1340, %v1337
    %v1344 = vadd.f32 %v1183, 1.0
    %v1345 = vlog2.pop %v1344
    %v1346 = vmul.f32 %v1345, 0.6931472
    %v1347 = vmul.f32 -0.5, %v1183
    %v1348 = vadd.f32 %v1347, 1.0
    %v1349 = vmul.f32 %v1348, %v1183
    %v1350 = vand.u32 2147483647, %v1183
    %vm1351 = vcmp.lt.f32.partialorder %v1350, 0.0004427343
    %v1352 = vsel %vm1351, %v1349, %v1346
    %v1353 = vadd.f32 %v1185, 1.0
    %v1354 = vlog2.pop %v1353
    %v1355 = vmul.f32 %v1354, 0.6931472
    %v1356 = vmul.f32 -0.5, %v1185
    %v1357 = vadd.f32 %v1356, 1.0
    %v1358 = vmul.f32 %v1357, %v1185
    %v1359 = vand.u32 2147483647, %v1185
    %vm1360 = vcmp.lt.f32.partialorder %v1359, 0.0004427343
    %v1361 = vsel %vm1360, %v1358, %v1355
    %v1362 = vadd.f32 %v1187, 1.0
    %v1363 = vlog2.pop %v1362
    %v1364 = vmul.f32 %v1363, 0.6931472
    %v1365 = vmul.f32 -0.5, %v1187
    %v1366 = vadd.f32 %v1365, 1.0
    %v1367 = vmul.f32 %v1366, %v1187
    %v1368 = vand.u32 2147483647, %v1187
    %vm1369 = vcmp.lt.f32.partialorder %v1368, 0.0004427343
    %v1370 = vsel %vm1369, %v1367, %v1364
    %v1371 = vadd.f32 %v1189, 1.0
    %v1372 = vlog2.pop %v1371
    %v1373 = vmul.f32 %v1372, 0.6931472
    %v1374 = vmul.f32 -0.5, %v1189
    %v1375 = vadd.f32 %v1374, 1.0
    %v1376 = vmul.f32 %v1375, %v1189
    %v1377 = vand.u32 2147483647, %v1189
    %vm1378 = vcmp.lt.f32.partialorder %v1377, 0.0004427343
    %v1379 = vsel %vm1378, %v1376, %v1373
    %v1380 = vadd.f32 %v1191, 1.0
    %v1381 = vlog2.pop %v1380
    %v1382 = vmul.f32 %v1381, 0.6931472
    %v1383 = vmul.f32 -0.5, %v1191
    %v1384 = vadd.f32 %v1383, 1.0
    %v1385 = vmul.f32 %v1384, %v1191
    %v1386 = vand.u32 2147483647, %v1191
    %vm1387 = vcmp.lt.f32.partialorder %v1386, 0.0004427343
    %v1388 = vsel %vm1387, %v1385, %v1382
    %v1389 = vadd.f32 %v1193, 1.0
    %v1390 = vlog2.pop %v1389
    %v1391 = vmul.f32 %v1390, 0.6931472
    %v1392 = vmul.f32 -0.5, %v1193
    %v1393 = vadd.f32 %v1392, 1.0
    %v1394 = vmul.f32 %v1393, %v1193
    %v1395 = vand.u32 2147483647, %v1193
    %vm1396 = vcmp.lt.f32.partialorder %v1395, 0.0004427343
    %v1397 = vsel %vm1396, %v1394, %v1391
    %v1398 = vadd.f32 %v1195, 1.0
    %v1399 = vlog2.pop %v1398
    %v1400 = vmul.f32 %v1399, 0.6931472
    %v1401 = vmul.f32 -0.5, %v1195
    %v1402 = vadd.f32 %v1401, 1.0
    %v1403 = vmul.f32 %v1402, %v1195
    %v1404 = vand.u32 2147483647, %v1195
    %vm1405 = vcmp.lt.f32.partialorder %v1404, 0.0004427343
    %v1406 = vsel %vm1405, %v1403, %v1400
    %v1407 = vadd.f32 %v1197, 1.0
    %v1408 = vlog2.pop %v1407
    %v1409 = vmul.f32 %v1408, 0.6931472
    %v1410 = vmul.f32 -0.5, %v1197
    %v1411 = vadd.f32 %v1410, 1.0
    %v1412 = vmul.f32 %v1411, %v1197
    %v1413 = vand.u32 2147483647, %v1197
    %vm1414 = vcmp.lt.f32.partialorder %v1413, 0.0004427343
    %v1415 = vsel %vm1414, %v1412, %v1409
    %v1416 = vadd.f32 %v1199, 1.0
    %v1417 = vlog2.pop %v1416
    %v1418 = vmul.f32 %v1417, 0.6931472
    %v1419 = vmul.f32 -0.5, %v1199
    %v1420 = vadd.f32 %v1419, 1.0
    %v1421 = vmul.f32 %v1420, %v1199
    %v1422 = vand.u32 2147483647, %v1199
    %vm1423 = vcmp.lt.f32.partialorder %v1422, 0.0004427343
    %v1424 = vsel %vm1423, %v1421, %v1418
    %v1425 = vadd.f32 %v1201, 1.0
    %v1426 = vlog2.pop %v1425
    %v1427 = vmul.f32 %v1426, 0.6931472
    %v1428 = vmul.f32 -0.5, %v1201
    %v1429 = vadd.f32 %v1428, 1.0
    %v1430 = vmul.f32 %v1429, %v1201
    %v1431 = vand.u32 2147483647, %v1201
    %vm1432 = vcmp.lt.f32.partialorder %v1431, 0.0004427343
    %v1433 = vsel %vm1432, %v1430, %v1427
    %v1434 = vadd.f32 %v1203, 1.0
    %v1435 = vlog2.pop %v1434
    %v1436 = vmul.f32 %v1435, 0.6931472
    %v1437 = vmul.f32 -0.5, %v1203
    %v1438 = vadd.f32 %v1437, 1.0
    %v1439 = vmul.f32 %v1438, %v1203
    %v1440 = vand.u32 2147483647, %v1203
    %vm1441 = vcmp.lt.f32.partialorder %v1440, 0.0004427343
    %v1442 = vsel %vm1441, %v1439, %v1436
    %v1443 = vadd.f32 %v1205, 1.0
    %v1444 = vlog2.pop %v1443
    %v1445 = vmul.f32 %v1444, 0.6931472
    %v1446 = vmul.f32 -0.5, %v1205
    %v1447 = vadd.f32 %v1446, 1.0
    %v1448 = vmul.f32 %v1447, %v1205
    %v1449 = vand.u32 2147483647, %v1205
    %vm1450 = vcmp.lt.f32.partialorder %v1449, 0.0004427343
    %v1451 = vsel %vm1450, %v1448, %v1445
    %v1452 = vadd.f32 %v1207, 1.0
    %v1453 = vlog2.pop %v1452
    %v1454 = vmul.f32 %v1453, 0.6931472
    %v1455 = vmul.f32 -0.5, %v1207
    %v1456 = vadd.f32 %v1455, 1.0
    %v1457 = vmul.f32 %v1456, %v1207
    %v1458 = vand.u32 2147483647, %v1207
    %vm1459 = vcmp.lt.f32.partialorder %v1458, 0.0004427343
    %v1460 = vsel %vm1459, %v1457, %v1454
    %v1461 = vadd.f32 %v1209, 1.0
    %v1462 = vlog2.pop %v1461
    %v1463 = vmul.f32 %v1462, 0.6931472
    %v1464 = vmul.f32 -0.5, %v1209
    %v1465 = vadd.f32 %v1464, 1.0
    %v1466 = vmul.f32 %v1465, %v1209
    %v1467 = vand.u32 2147483647, %v1209
    %vm1468 = vcmp.lt.f32.partialorder %v1467, 0.0004427343
    %v1469 = vsel %vm1468, %v1466, %v1463
    %v1470 = vadd.f32 %v1211, 1.0
    %v1471 = vlog2.pop %v1470
    %v1472 = vmul.f32 %v1471, 0.6931472
    %v1473 = vmul.f32 -0.5, %v1211
    %v1474 = vadd.f32 %v1473, 1.0
    %v1475 = vmul.f32 %v1474, %v1211
    %v1476 = vand.u32 2147483647, %v1211
    %vm1477 = vcmp.lt.f32.partialorder %v1476, 0.0004427343
    %v1478 = vsel %vm1477, %v1475, %v1472
    %v1479 = vadd.f32 %v1213, 1.0
    %v1480 = vlog2.pop %v1479
    %v1481 = vmul.f32 %v1480, 0.6931472
    %v1482 = vmul.f32 -0.5, %v1213
    %v1483 = vadd.f32 %v1482, 1.0
    %v1484 = vmul.f32 %v1483, %v1213
    %v1485 = vand.u32 2147483647, %v1213
    %vm1486 = vcmp.lt.f32.partialorder %v1485, 0.0004427343
    %v1487 = vsel %vm1486, %v1484, %v1481
    %v1488 = vadd.f32 %v1215, 1.0
    %v1489 = vlog2.pop %v1488
    %v1490 = vmul.f32 %v1489, 0.6931472
    %v1491 = vmul.f32 -0.5, %v1215
    %v1492 = vadd.f32 %v1491, 1.0
    %v1493 = vmul.f32 %v1492, %v1215
    %v1494 = vand.u32 2147483647, %v1215
    %vm1495 = vcmp.lt.f32.partialorder %v1494, 0.0004427343
    %v1496 = vsel %vm1495, %v1493, %v1490
    %v1497 = vadd.f32 %v1217, 1.0
    %v1498 = vlog2.pop %v1497
    %v1499 = vmul.f32 %v1498, 0.6931472
    %v1500 = vmul.f32 -0.5, %v1217
    %v1501 = vadd.f32 %v1500, 1.0
    %v1502 = vmul.f32 %v1501, %v1217
    %v1503 = vand.u32 2147483647, %v1217
    %vm1504 = vcmp.lt.f32.partialorder %v1503, 0.0004427343
    %v1505 = vsel %vm1504, %v1502, %v1499
    %v1506 = vadd.f32 %v1058, %v1226
    %v1507 = vadd.f32 %v1059, %v1235
    %v1508 = vadd.f32 %v1060, %v1244
    %v1509 = vadd.f32 %v1061, %v1253
    %v1510 = vadd.f32 %v1062, %v1262
    %v1511 = vadd.f32 %v1063, %v1271
    %v1512 = vadd.f32 %v1064, %v1280
    %v1513 = vadd.f32 %v1065, %v1289
    %v1514 = vadd.f32 %v1066, %v1298
    %v1515 = vadd.f32 %v1067, %v1307
    %v1516 = vadd.f32 %v1068, %v1316
    %v1517 = vadd.f32 %v1069, %v1325
    %v1518 = vadd.f32 %v1070, %v1334
    %v1519 = vadd.f32 %v1071, %v1343
    %v1520 = vadd.f32 %v1072, %v1352
    %v1521 = vadd.f32 %v1073, %v1361
    %v1522 = vadd.f32 %v1074, %v1370
    %v1523 = vadd.f32 %v1075, %v1379
    %v1524 = vadd.f32 %v1076, %v1388
    %v1525 = vadd.f32 %v1077, %v1397
    %v1526 = vadd.f32 %v1078, %v1406
    %v1527 = vadd.f32 %v1079, %v1415
    %v1528 = vadd.f32 %v1080, %v1424
    %v1529 = vadd.f32 %v1081, %v1433
    %v1530 = vadd.f32 %v1082, %v1442
    %v1531 = vadd.f32 %v1083, %v1451
    %v1532 = vadd.f32 %v1084, %v1460
    %v1533 = vadd.f32 %v1085, %v1469
    %v1534 = vadd.f32 %v1086, %v1478
    %v1535 = vadd.f32 %v1087, %v1487
    %v1536 = vadd.f32 %v1088, %v1496
    %v1537 = vadd.f32 %v1089, %v1505
    %v1538 = vld [vmem:[%s5] sm:$0xff]
    %v1539 = vld [vmem:[%s6] sm:$0xff]
    %1541 = vset.pattern.permute.xlu0 0
    %1542 = vperm.xlu0 %1541, %v1539
    %v1543 = vpop.permute.xlu0 %1542
    %v1546 = vsel %vm689, %v1538, 0
    %1548 = vmatprep.subr.mxu0 %v1507
    %1549 = vmatpush1.msra.mxu0 %v1506
    %1550 = vmatprep.subr.mxu0 %v1515
    %1551 = vmatpush1.msra.mxu0 %v1514
    %1552 = vmatprep.subr.mxu0 %v1523
    %1553 = vmatpush1.msra.mxu0 %v1522
    %1554 = vmatprep.subr.mxu0 %v1531
    %1555 = vmatpush1.msra.mxu0 %v1530
    %1556 = vmatprep.subr.mxu0 0.0
    %1557 = vmatpush1.msra.mxu0 0.0
    %1558 = vmatprep.subr.mxu0 0.0
    %1559 = vmatpush1.msra.mxu0 0.0
    %1560 = vmatprep.subr.mxu0 0.0
    %1561 = vmatpush1.msra.mxu0 0.0
    %1562 = vmatprep.subr.mxu0 0.0
    %1563 = vmatpush1.msra.mxu0 0.0
    %1564 = vmatprep.subr.mxu0 0.0
    %1565 = vmatpush1.msra.mxu0 0.0
    %1566 = vmatprep.subr.mxu0 0.0
    %1567 = vmatpush1.msra.mxu0 0.0
    %1568 = vmatprep.subr.mxu0 0.0
    %1569 = vmatpush1.msra.mxu0 0.0
    %1570 = vmatprep.subr.mxu0 0.0
    %1571 = vmatpush1.msra.mxu0 0.0
    %1572 = vmatprep.subr.mxu0 0.0
    %1573 = vmatpush1.msra.mxu0 0.0
    %1574 = vmatprep.subr.mxu0 0.0
    %1575 = vmatpush1.msra.mxu0 0.0
    %1576 = vmatprep.subr.mxu0 0.0
    %1577 = vmatpush1.msra.mxu0 0.0
    %1578 = vmatprep.subr.mxu0 0.0
    %1579 = vmatpush1.msra.mxu0 0.0
    %1580 = vmatprep.subr.mxu0 0.0
    %1581 = vmatpush1.msra.mxu0 0.0
    %1582 = vmatprep.subr.mxu0 0.0
    %1583 = vmatpush1.msra.mxu0 0.0
    %1584 = vmatprep.subr.mxu0 0.0
    %1585 = vmatpush1.msra.mxu0 0.0
    %1586 = vmatprep.subr.mxu0 0.0
    %1587 = vmatpush1.msra.mxu0 0.0
    %1588 = vmatprep.subr.mxu0 0.0
    %1589 = vmatpush1.msra.mxu0 0.0
    %1590 = vmatprep.subr.mxu0 0.0
    %1591 = vmatpush1.msra.mxu0 0.0
    %1592 = vmatprep.subr.mxu0 0.0
    %1593 = vmatpush1.msra.mxu0 0.0
    %1594 = vmatprep.subr.mxu0 0.0
    %1595 = vmatpush1.msra.mxu0 0.0
    %1596 = vmatprep.subr.mxu0 0.0
    %1597 = vmatpush1.msra.mxu0 0.0
    %1598 = vmatprep.subr.mxu0 0.0
    %1599 = vmatpush1.msra.mxu0 0.0
    %1600 = vmatprep.subr.mxu0 0.0
    %1601 = vmatpush1.msra.mxu0 0.0
    %1602 = vmatprep.subr.mxu0 0.0
    %1603 = vmatpush1.msra.mxu0 0.0
    %1604 = vmatprep.subr.mxu0 0.0
    %1605 = vmatpush1.msra.mxu0 0.0
    %1606 = vmatprep.subr.mxu0 0.0
    %1607 = vmatpush1.msra.mxu0 0.0
    %1608 = vmatprep.subr.mxu0 0.0
    %1609 = vmatpush1.msra.mxu0 0.0
    %1610 = vmatprep.subr.mxu0 0.0
    %1611 = vmatpush1.msra.mxu0 0.0
    %1612 = vmatprep.mubr.f32.mxu0 0.0
    %1613 = vmatmul.mubr.f32.gmra.mrb[0].mxu0 %v1546
    %v1614 = vpop.f32.mrb[0].mxu0
    %v1615 = vadd.f32 %v1543, %v1614
    %v1616 = vpop.f32.mrb[0].mxu0
    %v1617 = vadd.f32 %v1543, %v1616
    %1618 = vdwg.mxu0
    %1619 = vmatprep.subr.mxu0 %v1509
    %1620 = vmatpush1.msra.mxu0 %v1508
    %1621 = vmatprep.subr.mxu0 %v1517
    %1622 = vmatpush1.msra.mxu0 %v1516
    %1623 = vmatprep.subr.mxu0 %v1525
    %1624 = vmatpush1.msra.mxu0 %v1524
    %1625 = vmatprep.subr.mxu0 %v1533
    %1626 = vmatpush1.msra.mxu0 %v1532
    %1627 = vmatprep.subr.mxu0 0.0
    %1628 = vmatpush1.msra.mxu0 0.0
    %1629 = vmatprep.subr.mxu0 0.0
    %1630 = vmatpush1.msra.mxu0 0.0
    %1631 = vmatprep.subr.mxu0 0.0
    %1632 = vmatpush1.msra.mxu0 0.0
    %1633 = vmatprep.subr.mxu0 0.0
    %1634 = vmatpush1.msra.mxu0 0.0
    %1635 = vmatprep.subr.mxu0 0.0
    %1636 = vmatpush1.msra.mxu0 0.0
    %1637 = vmatprep.subr.mxu0 0.0
    %1638 = vmatpush1.msra.mxu0 0.0
    %1639 = vmatprep.subr.mxu0 0.0
    %1640 = vmatpush1.msra.mxu0 0.0
    %1641 = vmatprep.subr.mxu0 0.0
    %1642 = vmatpush1.msra.mxu0 0.0
    %1643 = vmatprep.subr.mxu0 0.0
    %1644 = vmatpush1.msra.mxu0 0.0
    %1645 = vmatprep.subr.mxu0 0.0
    %1646 = vmatpush1.msra.mxu0 0.0
    %1647 = vmatprep.subr.mxu0 0.0
    %1648 = vmatpush1.msra.mxu0 0.0
    %1649 = vmatprep.subr.mxu0 0.0
    %1650 = vmatpush1.msra.mxu0 0.0
    %1651 = vmatprep.subr.mxu0 0.0
    %1652 = vmatpush1.msra.mxu0 0.0
    %1653 = vmatprep.subr.mxu0 0.0
    %1654 = vmatpush1.msra.mxu0 0.0
    %1655 = vmatprep.subr.mxu0 0.0
    %1656 = vmatpush1.msra.mxu0 0.0
    %1657 = vmatprep.subr.mxu0 0.0
    %1658 = vmatpush1.msra.mxu0 0.0
    %1659 = vmatprep.subr.mxu0 0.0
    %1660 = vmatpush1.msra.mxu0 0.0
    %1661 = vmatprep.subr.mxu0 0.0
    %1662 = vmatpush1.msra.mxu0 0.0
    %1663 = vmatprep.subr.mxu0 0.0
    %1664 = vmatpush1.msra.mxu0 0.0
    %1665 = vmatprep.subr.mxu0 0.0
    %1666 = vmatpush1.msra.mxu0 0.0
    %1667 = vmatprep.subr.mxu0 0.0
    %1668 = vmatpush1.msra.mxu0 0.0
    %1669 = vmatprep.subr.mxu0 0.0
    %1670 = vmatpush1.msra.mxu0 0.0
    %1671 = vmatprep.subr.mxu0 0.0
    %1672 = vmatpush1.msra.mxu0 0.0
    %1673 = vmatprep.subr.mxu0 0.0
    %1674 = vmatpush1.msra.mxu0 0.0
    %1675 = vmatprep.subr.mxu0 0.0
    %1676 = vmatpush1.msra.mxu0 0.0
    %1677 = vmatprep.subr.mxu0 0.0
    %1678 = vmatpush1.msra.mxu0 0.0
    %1679 = vmatprep.subr.mxu0 0.0
    %1680 = vmatpush1.msra.mxu0 0.0
    %1681 = vmatprep.subr.mxu0 0.0
    %1682 = vmatpush1.msra.mxu0 0.0
    %1683 = vmatprep.mubr.f32.mxu0 0.0
    %1684 = vmatmul.mubr.f32.gmra.mrb[0].mxu0 %v1546
    %v1685 = vpop.f32.mrb[0].mxu0
    %v1686 = vadd.f32 %v1543, %v1685
    %v1687 = vpop.f32.mrb[0].mxu0
    %v1688 = vadd.f32 %v1543, %v1687
    %1689 = vdwg.mxu0
    %1690 = vmatprep.subr.mxu0 %v1511
    %1691 = vmatpush1.msra.mxu0 %v1510
    %1692 = vmatprep.subr.mxu0 %v1519
    %1693 = vmatpush1.msra.mxu0 %v1518
    %1694 = vmatprep.subr.mxu0 %v1527
    %1695 = vmatpush1.msra.mxu0 %v1526
    %1696 = vmatprep.subr.mxu0 %v1535
    %1697 = vmatpush1.msra.mxu0 %v1534
    %1698 = vmatprep.subr.mxu0 0.0
    %1699 = vmatpush1.msra.mxu0 0.0
    %1700 = vmatprep.subr.mxu0 0.0
    %1701 = vmatpush1.msra.mxu0 0.0
    %1702 = vmatprep.subr.mxu0 0.0
    %1703 = vmatpush1.msra.mxu0 0.0
    %1704 = vmatprep.subr.mxu0 0.0
    %1705 = vmatpush1.msra.mxu0 0.0
    %1706 = vmatprep.subr.mxu0 0.0
    %1707 = vmatpush1.msra.mxu0 0.0
    %1708 = vmatprep.subr.mxu0 0.0
    %1709 = vmatpush1.msra.mxu0 0.0
    %1710 = vmatprep.subr.mxu0 0.0
    %1711 = vmatpush1.msra.mxu0 0.0
    %1712 = vmatprep.subr.mxu0 0.0
    %1713 = vmatpush1.msra.mxu0 0.0
    %1714 = vmatprep.subr.mxu0 0.0
    %1715 = vmatpush1.msra.mxu0 0.0
    %1716 = vmatprep.subr.mxu0 0.0
    %1717 = vmatpush1.msra.mxu0 0.0
    %1718 = vmatprep.subr.mxu0 0.0
    %1719 = vmatpush1.msra.mxu0 0.0
    %1720 = vmatprep.subr.mxu0 0.0
    %1721 = vmatpush1.msra.mxu0 0.0
    %1722 = vmatprep.subr.mxu0 0.0
    %1723 = vmatpush1.msra.mxu0 0.0
    %1724 = vmatprep.subr.mxu0 0.0
    %1725 = vmatpush1.msra.mxu0 0.0
    %1726 = vmatprep.subr.mxu0 0.0
    %1727 = vmatpush1.msra.mxu0 0.0
    %1728 = vmatprep.subr.mxu0 0.0
    %1729 = vmatpush1.msra.mxu0 0.0
    %1730 = vmatprep.subr.mxu0 0.0
    %1731 = vmatpush1.msra.mxu0 0.0
    %1732 = vmatprep.subr.mxu0 0.0
    %1733 = vmatpush1.msra.mxu0 0.0
    %1734 = vmatprep.subr.mxu0 0.0
    %1735 = vmatpush1.msra.mxu0 0.0
    %1736 = vmatprep.subr.mxu0 0.0
    %1737 = vmatpush1.msra.mxu0 0.0
    %1738 = vmatprep.subr.mxu0 0.0
    %1739 = vmatpush1.msra.mxu0 0.0
    %1740 = vmatprep.subr.mxu0 0.0
    %1741 = vmatpush1.msra.mxu0 0.0
    %1742 = vmatprep.subr.mxu0 0.0
    %1743 = vmatpush1.msra.mxu0 0.0
    %1744 = vmatprep.subr.mxu0 0.0
    %1745 = vmatpush1.msra.mxu0 0.0
    %1746 = vmatprep.subr.mxu0 0.0
    %1747 = vmatpush1.msra.mxu0 0.0
    %1748 = vmatprep.subr.mxu0 0.0
    %1749 = vmatpush1.msra.mxu0 0.0
    %1750 = vmatprep.subr.mxu0 0.0
    %1751 = vmatpush1.msra.mxu0 0.0
    %1752 = vmatprep.subr.mxu0 0.0
    %1753 = vmatpush1.msra.mxu0 0.0
    %1754 = vmatprep.mubr.f32.mxu0 0.0
    %1755 = vmatmul.mubr.f32.gmra.mrb[0].mxu0 %v1546
    %v1756 = vpop.f32.mrb[0].mxu0
    %v1757 = vadd.f32 %v1543, %v1756
    %v1758 = vpop.f32.mrb[0].mxu0
    %v1759 = vadd.f32 %v1543, %v1758
    %1760 = vdwg.mxu0
    %1761 = vmatprep.subr.mxu0 %v1513
    %1762 = vmatpush1.msra.mxu0 %v1512
    %1763 = vmatprep.subr.mxu0 %v1521
    %1764 = vmatpush1.msra.mxu0 %v1520
    %1765 = vmatprep.subr.mxu0 %v1529
    %1766 = vmatpush1.msra.mxu0 %v1528
    %1767 = vmatprep.subr.mxu0 %v1537
    %1768 = vmatpush1.msra.mxu0 %v1536
    %1769 = vmatprep.subr.mxu0 0.0
    %1770 = vmatpush1.msra.mxu0 0.0
    %1771 = vmatprep.subr.mxu0 0.0
    %1772 = vmatpush1.msra.mxu0 0.0
    %1773 = vmatprep.subr.mxu0 0.0
    %1774 = vmatpush1.msra.mxu0 0.0
    %1775 = vmatprep.subr.mxu0 0.0
    %1776 = vmatpush1.msra.mxu0 0.0
    %1777 = vmatprep.subr.mxu0 0.0
    %1778 = vmatpush1.msra.mxu0 0.0
    %1779 = vmatprep.subr.mxu0 0.0
    %1780 = vmatpush1.msra.mxu0 0.0
    %1781 = vmatprep.subr.mxu0 0.0
    %1782 = vmatpush1.msra.mxu0 0.0
    %1783 = vmatprep.subr.mxu0 0.0
    %1784 = vmatpush1.msra.mxu0 0.0
    %1785 = vmatprep.subr.mxu0 0.0
    %1786 = vmatpush1.msra.mxu0 0.0
    %1787 = vmatprep.subr.mxu0 0.0
    %1788 = vmatpush1.msra.mxu0 0.0
    %1789 = vmatprep.subr.mxu0 0.0
    %1790 = vmatpush1.msra.mxu0 0.0
    %1791 = vmatprep.subr.mxu0 0.0
    %1792 = vmatpush1.msra.mxu0 0.0
    %1793 = vmatprep.subr.mxu0 0.0
    %1794 = vmatpush1.msra.mxu0 0.0
    %1795 = vmatprep.subr.mxu0 0.0
    %1796 = vmatpush1.msra.mxu0 0.0
    %1797 = vmatprep.subr.mxu0 0.0
    %1798 = vmatpush1.msra.mxu0 0.0
    %1799 = vmatprep.subr.mxu0 0.0
    %1800 = vmatpush1.msra.mxu0 0.0
    %1801 = vmatprep.subr.mxu0 0.0
    %1802 = vmatpush1.msra.mxu0 0.0
    %1803 = vmatprep.subr.mxu0 0.0
    %1804 = vmatpush1.msra.mxu0 0.0
    %1805 = vmatprep.subr.mxu0 0.0
    %1806 = vmatpush1.msra.mxu0 0.0
    %1807 = vmatprep.subr.mxu0 0.0
    %1808 = vmatpush1.msra.mxu0 0.0
    %1809 = vmatprep.subr.mxu0 0.0
    %1810 = vmatpush1.msra.mxu0 0.0
    %1811 = vmatprep.subr.mxu0 0.0
    %1812 = vmatpush1.msra.mxu0 0.0
    %1813 = vmatprep.subr.mxu0 0.0
    %1814 = vmatpush1.msra.mxu0 0.0
    %1815 = vmatprep.subr.mxu0 0.0
    %1816 = vmatpush1.msra.mxu0 0.0
    %1817 = vmatprep.subr.mxu0 0.0
    %1818 = vmatpush1.msra.mxu0 0.0
    %1819 = vmatprep.subr.mxu0 0.0
    %1820 = vmatpush1.msra.mxu0 0.0
    %1821 = vmatprep.subr.mxu0 0.0
    %1822 = vmatpush1.msra.mxu0 0.0
    %1823 = vmatprep.subr.mxu0 0.0
    %1824 = vmatpush1.msra.mxu0 0.0
    %1825 = vmatprep.mubr.f32.mxu0 0.0
    %1826 = vmatmul.mubr.f32.gmra.mrb[0].mxu0 %v1546
    %v1827 = vpop.f32.mrb[0].mxu0
    %v1828 = vadd.f32 %v1543, %v1827
    %v1829 = vpop.f32.mrb[0].mxu0
    %v1830 = vadd.f32 %v1543, %v1829
    %1831 = vdwg.mxu0
    %v1832 = vmul.f32 %v1615, 1.442695
    %v1833 = vpow.pop %v1832
    %v1834 = vmul.f32 %v1617, 1.442695
    %v1835 = vpow.pop %v1834
    %v1836 = vmul.f32 %v1686, 1.442695
    %v1837 = vpow.pop %v1836
    %v1838 = vmul.f32 %v1688, 1.442695
    %v1839 = vpow.pop %v1838
    %v1840 = vmul.f32 %v1757, 1.442695
    %v1841 = vpow.pop %v1840
    %v1842 = vmul.f32 %v1759, 1.442695
    %v1843 = vpow.pop %v1842
    %v1844 = vmul.f32 %v1828, 1.442695
    %v1845 = vpow.pop %v1844
    %v1846 = vmul.f32 %v1830, 1.442695
    %v1847 = vpow.pop %v1846
    %1848 = vst [vmem:[#allocation2] sm:$0xff] %v1833
    %1849 = vst [vmem:[#allocation2 + $0x8] sm:$0xff] %v1835
    %1850 = vst [vmem:[#allocation2 + $0x10] sm:$0xff] %v1837
    %1851 = vst [vmem:[#allocation2 + $0x18] sm:$0xff] %v1839
    %1852 = vst [vmem:[#allocation2 + $0x20] sm:$0xff] %v1841
    %1853 = vst [vmem:[#allocation2 + $0x28] sm:$0xff] %v1843
    %1854 = vst [vmem:[#allocation2 + $0x30] sm:$0xff] %v1845
    %1855 = vst [vmem:[#allocation2 + $0x38] sm:$0xff] %v1847
    // Predicated region
    $region30: #{tpu_custom_call.1} parent=1 // pred_check
      _
    $region31: #{tpu_custom_call.1} parent=1 // pred_check_branch
      %1857 = sbr.rel (0) target = $region33
    $region32: #{tpu_custom_call.1} parent=1 // pred_region
      %s1859 = ssub.s32 1024, 1024
      %1860 = vsyncadd [#allocation3], %s1859
      %s1862 = sshll.u32 [#allocation2], 4
      %s1863 = int_to_ptr.vmem [resolvable:$true] %s1862
      %1865 = dma.vmem_to_hbm [thread:$0]  %s1863, 1024, %s7, [#allocation3]
    $region33: #{tpu_custom_call.1} parent=1 // pred_fallthru
      _
    // Predicated region
    $region34: #{tpu_custom_call.1} parent=1 // pred_check
      _
    $region35: #{tpu_custom_call.1} parent=1 // pred_check_branch
      %1867 = sbr.rel (0) target = $region37
    $region36: #{tpu_custom_call.1} parent=1 // pred_region
      %1868 = dma.done [#allocation3], 1024
    $region37: #{tpu_custom_call.1} parent=1 // pred_fallthru
      _
    %1869 = vsyncpa [#allocation3], 1

</llo_original>
